<compile_context>
chip_gen: v7x
topology: tpu7x:2x2x1
jax: 0.10.0
libtpu: 0.0.40
codegen_flags: <defaults>
</compile_context>

<pallas_src>
import functools
import math
import numpy as np

import jax
import jax.numpy as jnp
from jax.experimental import pallas as pl
from jax.experimental.pallas import tpu as pltpu


def _round_up(x, m):
    return (x + m - 1) // m * m


def _const_spec(block_shape, index_map):
    """Grid-invariant input (constant index map): single-buffer it — the default 2-deep
    pipeline would allocate a dead second VMEM buffer. Falls back gracefully if this JAX
    build does not expose BlockSpec.pipeline_mode."""
    try:
        return pl.BlockSpec(block_shape, index_map, pipeline_mode=pl.Buffered(1))
    except (TypeError, AttributeError):
        return pl.BlockSpec(block_shape, index_map)


def _lorentz_renorm(v):
    """v / sqrt(|<v,v>_L|) with Lorentz signature (-,+,...,+), time at lane 0.
    Lane-0 slice for the time part + one masked space-only reduce (no cancellation)."""
    col = jax.lax.broadcasted_iota(jnp.int32, v.shape, 1)
    v_time = v[:, 0:1]
    space_sq = jnp.sum(jnp.where(col == 0, 0.0, v * v), axis=-1, keepdims=True)
    neg_inner = v_time * v_time - space_sq                       # -<v,v>_L
    return v * jax.lax.rsqrt(jnp.maximum(jnp.abs(neg_inner), 1e-8))


# ---------------------------------------------------------------------------------------
# Fused kernel: depth x LorentzGraphConvolution + per-tree Lorentz mid_point.
# grid = (depth,), sequential ("arbitrary"); node features are carried in the VMEM-resident
# h output block (constant index map -> HBM writeback only at grid end).
# ---------------------------------------------------------------------------------------
def _encoder_kernel(scale_smem,                               # (depth,) f32, SMEM prefetch
                    x_ref, adj_ref, scope_hbm, w_ref, b_ref,  # inputs (scope stays in HBM)
                    h_out_ref, vec_out_ref,                   # outputs (h_out = carry)
                    scope_buf, scope_sem):                    # VMEM landing buffer + DMA sem
    l = pl.program_id(0)
    last = pl.num_programs(0) - 1
    prefetch_step = jnp.maximum(last - 1, 0)                  # also correct for depth == 1

    @pl.when(l == 0)
    def _():
        h_out_ref[...] = x_ref[...]                           # embedding seeds the carry

    # Prefetch the scope matrix from HBM one step before the fused mid_point needs it.
    @pl.when(l == prefetch_step)
    def _():
        pltpu.make_async_copy(scope_hbm, scope_buf, scope_sem).start()

    h = h_out_ref[...]                                        # relu already folded in (l > 0)

    # ---- LorentzLinear (dropout = identity in eval mode; nonlin folded into carry store) --
    # bf16 operands, f32 MXU accumulation. Padded lanes of W / b are exactly zero, so the
    # padded feature lanes of z / hl / s stay exactly zero throughout.
    z = jnp.dot(h.astype(jnp.bfloat16), w_ref[...],
                preferred_element_type=jnp.float32) + b_ref[...]
    col = jax.lax.broadcasted_iota(jnp.int32, z.shape, 1)
    is_time = col == 0
    z_time = z[:, 0:1]                                        # x.narrow(-1, 0, 1)
    space_sq = jnp.maximum(
        jnp.sum(jnp.where(is_time, 0.0, z * z), axis=-1, keepdims=True), 1e-8)
    time = jax.nn.sigmoid(z_time) * scale_smem[l] + 1.1       # caller passes exp(scale)
    fac = jnp.sqrt((time * time - 1.0) / space_sq)
    hl = jnp.where(is_time, time, z * fac)                    # cat([time, x*sqrt(.)])

    # ---- LorentzAgg (use_att=False): support = adj @ hl, re-project onto hyperboloid -----
    # TODO(synk): for production N replace this dense N_pad x N_pad contraction with a
    #             scalar-prefetched neighbor-list aggregation and/or a "parallel" row-block
    #             grid axis (v7x dual TensorCore, 64 MiB VMEM).
    s = jnp.dot(adj_ref[...], hl.astype(jnp.bfloat16),
                preferred_element_type=jnp.float32)
    h_new = _lorentz_renorm(s)

    # relu of the NEXT layer's LorentzLinear is folded into the carry store; the raw
    # hyperboloid point is kept only for the final-layer output / mid_point.
    @pl.when(l != last)
    def _():
        h_out_ref[...] = jnp.maximum(h_new, 0.0)

    # ---- fused per-tree Lorentz mid_point on the final layer -----------------------------
    @pl.when(l == last)
    def _():
        h_out_ref[...] = h_new
        pltpu.make_async_copy(scope_hbm, scope_buf, scope_sem).wait()
        m = jnp.dot(scope_buf[...], h_new.astype(jnp.bfloat16),
                    preferred_element_type=jnp.float32)        # row i = mean over tree i
        vec_out_ref[...] = _lorentz_renorm(m)


def _run_encoder(scale_exp, x_p, adj_p, scope_p, w_p, b_p):
    depth = w_p.shape[0]
    n_pad, d_pad = x_p.shape
    b_pad = scope_p.shape[0]

    grid_spec = pltpu.PrefetchScalarGridSpec(
        num_scalar_prefetch=1,                                  # per-layer exp(scale) in SMEM
        grid=(depth,),
        in_specs=[
            _const_spec((n_pad, d_pad), lambda l, s: (0, 0)),            # embedding (l==0)
            _const_spec((n_pad, n_pad), lambda l, s: (0, 0)),            # adj (bf16)
            pl.BlockSpec(memory_space=pl.ANY),                           # scope stays in HBM
            pl.BlockSpec((None, d_pad, d_pad), lambda l, s: (l, 0, 0)),  # W_t per layer (bf16)
            pl.BlockSpec((None, 1, d_pad), lambda l, s: (l, 0, 0)),      # bias per layer (f32)
        ],
        out_specs=[
            pl.BlockSpec((n_pad, d_pad), lambda l, s: (0, 0)),           # node features (carry)
            pl.BlockSpec((b_pad, d_pad), lambda l, s: (0, 0)),           # tree vecs
        ],
        scratch_shapes=[
            pltpu.VMEM((b_pad, n_pad), jnp.bfloat16),                    # scope landing buffer
            pltpu.SemaphoreType.DMA(()),
        ],
    )

    # Honest steady-state VMEM estimate: single-buffered grid-invariant inputs, double-
    # buffered per-layer weights, resident outputs, scope scratch.  Cap well under v7x's
    # 64 MiB physical VMEM to leave compiler headroom; demo sizes stay under the defaults.
    work = (n_pad * d_pad * 4                      # embedding block (f32, 1 buffer)
            + n_pad * n_pad * 2                    # adj (bf16, 1 buffer)
            + 2 * (d_pad * d_pad * 2 + d_pad * 4)  # W (bf16) + b (f32), double-buffered
            + n_pad * d_pad * 4                    # h output / carry (f32)
            + b_pad * d_pad * 4                    # tree vecs (f32)
            + b_pad * n_pad * 2)                   # scope scratch (bf16)
    vmem_limit = None if work <= (16 << 20) else min(int(1.25 * work), 48 * 1024 * 1024)

    return pl.pallas_call(
        _encoder_kernel,
        out_shape=(jax.ShapeDtypeStruct((n_pad, d_pad), jnp.float32),
                   jax.ShapeDtypeStruct((b_pad, d_pad), jnp.float32)),
        grid_spec=grid_spec,
        compiler_params=pltpu.CompilerParams(
            dimension_semantics=("arbitrary",),
            vmem_limit_bytes=vmem_limit),
    )(scale_exp, x_p, adj_p, scope_p, w_p, b_p)


# ---------------------------------------------------------------------------------------
# One-time host-side preparation (out of the per-call hot path).
# ---------------------------------------------------------------------------------------
def prepare_params(embedding, w_t, b, scale_param):
    """Zero-pad the feature dim to 128 lanes, cast weights to bf16, and exponentiate the
    LorentzLinear scale parameter (the torch module uses self.scale.exp() in forward)."""
    depth, d, _ = w_t.shape
    d_pad = max(_round_up(d, 128), 128)
    vocab = embedding.shape[0]
    emb_p = jnp.zeros((vocab, d_pad), jnp.float32).at[:, :d].set(embedding)
    w_p = (jnp.zeros((depth, d_pad, d_pad), jnp.float32)
           .at[:, :d, :d].set(w_t).astype(jnp.bfloat16))
    b_p = jnp.zeros((depth, 1, d_pad), jnp.float32).at[:, :, :d].set(b.reshape(depth, 1, d))
    padded = {"embedding": emb_p, "w_t": w_p, "b": b_p,
              "scale_exp": jnp.exp(scale_param.reshape(depth)).astype(jnp.float32)}
    return padded, d


def prepare_batch(adj, scope, n):
    """Once per batch (outside the jitted hot path): build the per-tree mean 'scope' matrix
    and pad + bf16-cast it and the adjacency.  N is padded to a lane-dense multiple of 128
    (MXU contraction dim), the tree batch to a bf16-sublane multiple of 16."""
    n_pad = max(_round_up(n, 128), 128)
    bsz = len(scope)
    b_pad = max(_round_up(bsz, 16), 16)
    sm = np.zeros((bsz, n), np.float32)
    for i, (st, ed) in enumerate(scope):
        sm[i, st:st + ed] = 1.0 / ed                      # mean over tree i's nodes
    adj_p = (jnp.zeros((n_pad, n_pad), jnp.float32)
             .at[:n, :n].set(jnp.asarray(adj)).astype(jnp.bfloat16))
    scope_p = (jnp.zeros((b_pad, n_pad), jnp.float32)
               .at[:bsz, :n].set(jnp.asarray(sm)).astype(jnp.bfloat16))
    return adj_p, scope_p, jnp.asarray(sm)


# ---------------------------------------------------------------------------------------
# Forward: the embedding gather + x padding are XLA glue; the hot path is one Pallas call.
# ---------------------------------------------------------------------------------------
@functools.partial(jax.jit, static_argnames=("n", "bsz", "d_true"))
def hyperbolic_jtnn_encoder_forward(x_ids, adj_p, scope_p, padded_params, n, bsz, d_true):
    n_pad = adj_p.shape[0]
    d_pad = padded_params["embedding"].shape[1]
    emb = jnp.take(padded_params["embedding"], x_ids, axis=0)       # nn.Embedding (glue)
    x_p = jnp.zeros((n_pad, d_pad), jnp.float32).at[:n].set(emb)
    h_pad, vec_pad = _run_encoder(padded_params["scale_exp"], x_p, adj_p, scope_p,
                                  padded_params["w_t"], padded_params["b"])
    return vec_pad[:bsz, :d_true], h_pad[:n, :d_true]


# ---------------------------------------------------------------------------------------
# Pure-JAX reference (mirrors the torch forward; same bf16-operand / f32-accum matmul policy).
# ---------------------------------------------------------------------------------------
def reference_forward(adj, x_ids, scope_mat, params):
    h = jnp.take(params["embedding"], x_ids, axis=0)
    scale = jnp.exp(params["scale"])
    depth = params["w_t"].shape[0]
    for l in range(depth):
        hin = jax.nn.relu(h) if l > 0 else h
        z = jnp.dot(hin.astype(jnp.bfloat16), params["w_t"][l].astype(jnp.bfloat16),
                    preferred_element_type=jnp.float32) + params["b"][l]
        time = jax.nn.sigmoid(z[:, :1]) * scale[l] + 1.1
        xs = z[:, 1:]
        sq = jnp.maximum(jnp.sum(xs * xs, -1, keepdims=True), 1e-8)
        hl = jnp.concatenate([time, xs * jnp.sqrt((time * time - 1.0) / sq)], -1)
        s = jnp.dot(adj.astype(jnp.bfloat16), hl.astype(jnp.bfloat16),
                    preferred_element_type=jnp.float32)
        neg_inner = s[:, :1] ** 2 - jnp.sum(s[:, 1:] ** 2, -1, keepdims=True)
        h = s / jnp.sqrt(jnp.maximum(jnp.abs(neg_inner), 1e-8))
    m = jnp.dot(scope_mat.astype(jnp.bfloat16), h.astype(jnp.bfloat16),
                preferred_element_type=jnp.float32)
    neg_inner = m[:, :1] ** 2 - jnp.sum(m[:, 1:] ** 2, -1, keepdims=True)
    vecs = m / jnp.sqrt(jnp.maximum(jnp.abs(neg_inner), 1e-8))
    return vecs, h


if __name__ == "__main__":
    key = jax.random.PRNGKey(0)
    vocab, d, depth = 50, 32, 3            # args.dim = 32, args.num_layers_tree = 3
    tree_sizes = [8, 10, 6]                # 3 junction trees in the batch
    n = sum(tree_sizes)
    scope, st = [], 0
    for sz in tree_sizes:
        scope.append((st, sz)); st += sz

    k_emb, k_w, k_x = jax.random.split(key, 3)
    emb_table = jax.random.normal(k_emb, (vocab, d), jnp.float32) * 0.1
    stdv = 1.0 / math.sqrt(d)
    w = jax.random.uniform(k_w, (depth, d, d), jnp.float32, -stdv, stdv)   # nn.Linear (out,in)
    w = w.at[:, :, 0].set(0.0)             # LorentzLinear.reset_parameters zeroes input col 0
    w_t = jnp.transpose(w, (0, 2, 1))      # kernel computes h @ W.T
    b = jnp.zeros((depth, d), jnp.float32)                        # bias init constant 0
    scale_param = jnp.full((depth,), math.log(10.0), jnp.float32)  # raw param; fwd uses exp()

    x_ids = jax.random.randint(k_x, (n,), 0, vocab, dtype=jnp.int32)

    # Adjacency: path edges within each tree + self loops, symmetric normalization
    # (stands in for DataProcess(adj, ...) — the kernel consumes whatever adjacency it gets).
    A = np.zeros((n, n), np.float32)
    for (s0, ed) in scope:
        for i in range(s0, s0 + ed - 1):
            A[i, i + 1] = 1.0
            A[i + 1, i] = 1.0
    A += np.eye(n, dtype=np.float32)
    dinv = 1.0 / np.sqrt(A.sum(1))
    A = A * dinv[None, :] * dinv[:, None]
    adj = jnp.asarray(A)

    padded_params, d_true = prepare_params(emb_table, w_t, b, scale_param)  # one-time
    adj_p, scope_p, scope_mat = prepare_batch(A, scope, n)                  # once per batch

    tree_vecs, h = hyperbolic_jtnn_encoder_forward(
        x_ids, adj_p, scope_p, padded_params, n=n, bsz=len(scope), d_true=d_true)
    jax.block_until_ready((tree_vecs, h))

    params_true = {"embedding": emb_table, "w_t": w_t, "b": b, "scale": scale_param}
    ref_vecs, ref_h = reference_forward(adj, x_ids, scope_mat, params_true)
    assert tree_vecs.shape == (len(scope), d) and h.shape == (n, d)
    # tolerance reflects the documented bf16-operand / f32-accumulation matmul policy
    assert jnp.allclose(h, ref_h, atol=2e-2, rtol=2e-2), float(jnp.max(jnp.abs(h - ref_h)))
    assert jnp.allclose(tree_vecs, ref_vecs, atol=2e-2, rtol=2e-2)
    print("KERNEL_OK")
</pallas_src>

<mosaic_0001>
module attributes {stable_mosaic.version = 11 : i64} {
  func.func @_encoder_kernel(%arg0: i32, %arg1: memref<3xf32, #tpu.memory_space<smem>>, %arg2: memref<128x128xf32, #tpu.memory_space<vmem>>, %arg3: memref<128x128xbf16, #tpu.memory_space<vmem>>, %arg4: memref<16x128xbf16, #tpu.memory_space<any>>, %arg5: memref<1x128x128xbf16, #tpu.memory_space<vmem>>, %arg6: memref<1x1x128xf32, #tpu.memory_space<vmem>>, %arg7: memref<128x128xf32, #tpu.memory_space<vmem>>, %arg8: memref<16x128xf32, #tpu.memory_space<vmem>>, %arg9: memref<16x128xbf16, #tpu.memory_space<vmem>>, %arg10: memref<!tpu.dma_semaphore, #tpu.memory_space<semaphore_mem>>) attributes {dimension_semantics = [#tpu.dimension_semantics<arbitrary>], iteration_bounds = array<i64: 3>, scalar_prefetch = 1 : i64, scratch_operands = 2 : i64, tpu.core_type = #tpu.core_type<tc>, window_params = [{pipeline_mode = #tpu.pipeline_mode<synchronous>, transform_indices = @transform_0, window_bounds = array<i64: 128, 128>}, {pipeline_mode = #tpu.pipeline_mode<synchronous>, transform_indices = @transform_1, window_bounds = array<i64: 128, 128>}, {}, {transform_indices = @transform_3, window_bounds = array<i64: 1, 128, 128>}, {transform_indices = @transform_4, window_bounds = array<i64: 1, 1, 128>}, {pipeline_mode = #tpu.pipeline_mode<synchronous>, transform_indices = @transform_5, window_bounds = array<i64: 128, 128>}, {pipeline_mode = #tpu.pipeline_mode<synchronous>, transform_indices = @transform_6, window_bounds = array<i64: 16, 128>}]} {
    %c1_i32 = arith.constant 1 : i32
    %c0_i32 = arith.constant 0 : i32
    %0 = arith.maxsi %c1_i32, %c0_i32 : i32
    %c0_i32_0 = arith.constant 0 : i32
    %1 = arith.cmpi eq, %arg0, %c0_i32_0 : i32
    %2 = arith.extui %1 : i1 to i32
    %c0_i32_1 = arith.constant 0 : i32
    %3 = arith.cmpi ne, %2, %c0_i32_1 : i32
    scf.if %3 {
      %c0_27 = arith.constant 0 : index
      %c0_28 = arith.constant 0 : index
      %74 = vector.load %arg2[%c0_27, %c0_28] : memref<128x128xf32, #tpu.memory_space<vmem>>, vector<128x128xf32>
      %c0_29 = arith.constant 0 : index
      %c0_30 = arith.constant 0 : index
      %75 = vector.load %arg7[%c0_29, %c0_30] : memref<128x128xf32, #tpu.memory_space<vmem>>, vector<128x128xf32>
      tpu.vector_store %arg7[%c0_29, %c0_30], %74 {strides = array<i32>} : memref<128x128xf32, #tpu.memory_space<vmem>>, vector<128x128xf32>,
    } else {
    }
    %4 = arith.cmpi eq, %arg0, %0 : i32
    %5 = arith.extui %4 : i1 to i32
    %c0_i32_2 = arith.constant 0 : i32
    %6 = arith.cmpi ne, %5, %c0_i32_2 : i32
    scf.if %6 {
      tpu.enqueue_dma source(%arg4 : memref<16x128xbf16, #tpu.memory_space<any>>) target(%arg9 : memref<16x128xbf16, #tpu.memory_space<vmem>>) target_semaphore(%arg10 : memref<!tpu.dma_semaphore, #tpu.memory_space<semaphore_mem>>)
    } else {
    }
    %c0 = arith.constant 0 : index
    %c0_3 = arith.constant 0 : index
    %7 = vector.load %arg7[%c0, %c0_3] : memref<128x128xf32, #tpu.memory_space<vmem>>, vector<128x128xf32>
    %8 = arith.truncf %7 : vector<128x128xf32> to vector<128x128xbf16>
    %c0_4 = arith.constant 0 : index
    %c0_5 = arith.constant 0 : index
    %c0_6 = arith.constant 0 : index
    %9 = vector.load %arg5[%c0_4, %c0_5, %c0_6] : memref<1x128x128xbf16, #tpu.memory_space<vmem>>, vector<1x128x128xbf16>
    %10 = vector.shape_cast %9 : vector<1x128x128xbf16> to vector<128x128xbf16>
    %cst = arith.constant dense<0.000000e+00> : vector<128x128xf32>
    %11 = tpu.matmul %8, %10, %cst {dimension_numbers = #tpu.dot_dimension_numbers<[1], [0], [0], [1], [0, 0, 1, 1], [], []>} : vector<128x128xbf16>, vector<128x128xbf16>, vector<128x128xf32> -> vector<128x128xf32>
    %c0_7 = arith.constant 0 : index
    %c0_8 = arith.constant 0 : index
    %c0_9 = arith.constant 0 : index
    %12 = vector.load %arg6[%c0_7, %c0_8, %c0_9] : memref<1x1x128xf32, #tpu.memory_space<vmem>>, vector<1x1x128xf32>
    %13 = vector.shape_cast %12 : vector<1x1x128xf32> to vector<1x128xf32>
    %14 = vector.broadcast %13 : vector<1x128xf32> to vector<128x128xf32>
    %15 = arith.addf %11, %14 : vector<128x128xf32>
    %16 = tpu.iota {dimensions = array<i32: 1>} : vector<128x128xi32>
    %c0_i32_10 = arith.constant 0 : i32
    %17 = vector.broadcast %c0_i32_10 : i32 to vector<128x128xi32>
    %18 = arith.cmpi eq, %16, %17 : vector<128x128xi32>
    %19 = vector.extract_strided_slice %15 {offsets = [0, 0], sizes = [128, 1], strides = [1, 1]} : vector<128x128xf32> to vector<128x1xf32>
    %20 = arith.mulf %15, %15 : vector<128x128xf32>
    %cst_11 = arith.constant 0.000000e+00 : f32
    %21 = vector.broadcast %cst_11 : f32 to vector<128x128xf32>
    %22 = arith.select %18, %21, %20 : vector<128x128xi1>, vector<128x128xf32>
    %cst_12 = arith.constant dense<0.000000e+00> : vector<128xf32>
    %23 = vector.multi_reduction <add>, %22, %cst_12 [1] : vector<128x128xf32> to vector<128xf32>
    %24 = vector.shape_cast %23 : vector<128xf32> to vector<128x1xf32>
    %cst_13 = arith.constant 9.99999993E-9 : f32
    %25 = vector.broadcast %cst_13 : f32 to vector<128x1xf32>
    %26 = arith.maximumf %24, %25 : vector<128x1xf32>
    %27 = arith.negf %19 : vector<128x1xf32>
    %28 = math.exp %27 : vector<128x1xf32>
    %cst_14 = arith.constant 1.000000e+00 : f32
    %29 = vector.broadcast %cst_14 : f32 to vector<128x1xf32>
    %30 = arith.addf %29, %28 : vector<128x1xf32>
    %31 = arith.divf %29, %30 : vector<128x1xf32>
    %32 = arith.index_cast %arg0 : i32 to index
    %33 = memref.load %arg1[%32] : memref<3xf32, #tpu.memory_space<smem>>
    %34 = vector.broadcast %33 : f32 to vector<128x1xf32>
    %35 = arith.mulf %31, %34 : vector<128x1xf32>
    %cst_15 = arith.constant 1.100000e+00 : f32
    %36 = vector.broadcast %cst_15 : f32 to vector<128x1xf32>
    %37 = arith.addf %35, %36 : vector<128x1xf32>
    %38 = arith.mulf %37, %37 : vector<128x1xf32>
    %cst_16 = arith.constant 1.000000e+00 : f32
    %39 = vector.broadcast %cst_16 : f32 to vector<128x1xf32>
    %40 = arith.subf %38, %39 : vector<128x1xf32>
    %41 = arith.divf %40, %26 : vector<128x1xf32>
    %42 = math.sqrt %41 : vector<128x1xf32>
    %43 = vector.broadcast %42 : vector<128x1xf32> to vector<128x128xf32>
    %44 = arith.mulf %15, %43 : vector<128x128xf32>
    %45 = vector.shape_cast %37 : vector<128x1xf32> to vector<128x1xf32>
    %46 = vector.broadcast %45 : vector<128x1xf32> to vector<128x128xf32>
    %47 = arith.select %18, %46, %44 : vector<128x128xi1>, vector<128x128xf32>
    %c0_17 = arith.constant 0 : index
    %c0_18 = arith.constant 0 : index
    %48 = vector.load %arg3[%c0_17, %c0_18] : memref<128x128xbf16, #tpu.memory_space<vmem>>, vector<128x128xbf16>
    %49 = arith.truncf %47 : vector<128x128xf32> to vector<128x128xbf16>
    %cst_19 = arith.constant dense<0.000000e+00> : vector<128x128xf32>
    %50 = tpu.matmul %48, %49, %cst_19 {dimension_numbers = #tpu.dot_dimension_numbers<[1], [0], [0], [1], [0, 0, 1, 1], [], []>} : vector<128x128xbf16>, vector<128x128xbf16>, vector<128x128xf32> -> vector<128x128xf32>
    %51 = tpu.iota {dimensions = array<i32: 1>} : vector<128x128xi32>
    %52 = vector.extract_strided_slice %50 {offsets = [0, 0], sizes = [128, 1], strides = [1, 1]} : vector<128x128xf32> to vector<128x1xf32>
    %c0_i32_20 = arith.constant 0 : i32
    %53 = vector.broadcast %c0_i32_20 : i32 to vector<128x128xi32>
    %54 = arith.cmpi eq, %51, %53 : vector<128x128xi32>
    %55 = arith.mulf %50, %50 : vector<128x128xf32>
    %cst_21 = arith.constant 0.000000e+00 : f32
    %56 = vector.broadcast %cst_21 : f32 to vector<128x128xf32>
    %57 = arith.select %54, %56, %55 : vector<128x128xi1>, vector<128x128xf32>
    %cst_22 = arith.constant dense<0.000000e+00> : vector<128xf32>
    %58 = vector.multi_reduction <add>, %57, %cst_22 [1] : vector<128x128xf32> to vector<128xf32>
    %59 = vector.shape_cast %58 : vector<128xf32> to vector<128x1xf32>
    %60 = arith.mulf %52, %52 : vector<128x1xf32>
    %61 = arith.subf %60, %59 : vector<128x1xf32>
    %62 = math.absf %61 : vector<128x1xf32>
    %cst_23 = arith.constant 9.99999993E-9 : f32
    %63 = vector.broadcast %cst_23 : f32 to vector<128x1xf32>
    %64 = arith.maximumf %62, %63 : vector<128x1xf32>
    %65 = math.rsqrt %64 : vector<128x1xf32>
    %66 = vector.broadcast %65 : vector<128x1xf32> to vector<128x128xf32>
    %67 = arith.mulf %50, %66 : vector<128x128xf32>
    %c2_i32 = arith.constant 2 : i32
    %68 = arith.cmpi ne, %arg0, %c2_i32 : i32
    %69 = arith.extui %68 : i1 to i32
    %c0_i32_24 = arith.constant 0 : i32
    %70 = arith.cmpi ne, %69, %c0_i32_24 : i32
    scf.if %70 {
      %cst_27 = arith.constant 0.000000e+00 : f32
      %74 = vector.broadcast %cst_27 : f32 to vector<128x128xf32>
      %75 = arith.maximumf %67, %74 : vector<128x128xf32>
      %c0_28 = arith.constant 0 : index
      %c0_29 = arith.constant 0 : index
      %76 = vector.load %arg7[%c0_28, %c0_29] : memref<128x128xf32, #tpu.memory_space<vmem>>, vector<128x128xf32>
      tpu.vector_store %arg7[%c0_28, %c0_29], %75 {strides = array<i32>} : memref<128x128xf32, #tpu.memory_space<vmem>>, vector<128x128xf32>,
    } else {
    }
    %c2_i32_25 = arith.constant 2 : i32
    %71 = arith.cmpi eq, %arg0, %c2_i32_25 : i32
    %72 = arith.extui %71 : i1 to i32
    %c0_i32_26 = arith.constant 0 : i32
    %73 = arith.cmpi ne, %72, %c0_i32_26 : i32
    scf.if %73 {
      %c0_27 = arith.constant 0 : index
      %c0_28 = arith.constant 0 : index
      %74 = vector.load %arg7[%c0_27, %c0_28] : memref<128x128xf32, #tpu.memory_space<vmem>>, vector<128x128xf32>
      tpu.vector_store %arg7[%c0_27, %c0_28], %67 {strides = array<i32>} : memref<128x128xf32, #tpu.memory_space<vmem>>, vector<128x128xf32>,
      tpu.wait_dma2 semaphore(%arg10 : memref<!tpu.dma_semaphore, #tpu.memory_space<semaphore_mem>>) src(%arg4 : memref<16x128xbf16, #tpu.memory_space<any>>) dst(%arg9 : memref<16x128xbf16, #tpu.memory_space<vmem>>)
      %c0_29 = arith.constant 0 : index
      %c0_30 = arith.constant 0 : index
      %75 = vector.load %arg9[%c0_29, %c0_30] : memref<16x128xbf16, #tpu.memory_space<vmem>>, vector<16x128xbf16>
      %76 = arith.truncf %67 : vector<128x128xf32> to vector<128x128xbf16>
      %cst_31 = arith.constant dense<0.000000e+00> : vector<16x128xf32>
      %77 = tpu.matmul %75, %76, %cst_31 {dimension_numbers = #tpu.dot_dimension_numbers<[1], [0], [0], [1], [0, 0, 1, 1], [], []>} : vector<16x128xbf16>, vector<128x128xbf16>, vector<16x128xf32> -> vector<16x128xf32>
      %78 = tpu.iota {dimensions = array<i32: 1>} : vector<16x128xi32>
      %79 = vector.extract_strided_slice %77 {offsets = [0, 0], sizes = [16, 1], strides = [1, 1]} : vector<16x128xf32> to vector<16x1xf32>
      %c0_i32_32 = arith.constant 0 : i32
      %80 = vector.broadcast %c0_i32_32 : i32 to vector<16x128xi32>
      %81 = arith.cmpi eq, %78, %80 : vector<16x128xi32>
      %82 = arith.mulf %77, %77 : vector<16x128xf32>
      %cst_33 = arith.constant 0.000000e+00 : f32
      %83 = vector.broadcast %cst_33 : f32 to vector<16x128xf32>
      %84 = arith.select %81, %83, %82 : vector<16x128xi1>, vector<16x128xf32>
      %cst_34 = arith.constant dense<0.000000e+00> : vector<16xf32>
      %85 = vector.multi_reduction <add>, %84, %cst_34 [1] : vector<16x128xf32> to vector<16xf32>
      %86 = vector.shape_cast %85 : vector<16xf32> to vector<16x1xf32>
      %87 = arith.mulf %79, %79 : vector<16x1xf32>
      %88 = arith.subf %87, %86 : vector<16x1xf32>
      %89 = math.absf %88 : vector<16x1xf32>
      %cst_35 = arith.constant 9.99999993E-9 : f32
      %90 = vector.broadcast %cst_35 : f32 to vector<16x1xf32>
      %91 = arith.maximumf %89, %90 : vector<16x1xf32>
      %92 = math.rsqrt %91 : vector<16x1xf32>
      %93 = vector.broadcast %92 : vector<16x1xf32> to vector<16x128xf32>
      %94 = arith.mulf %77, %93 : vector<16x128xf32>
      %c0_36 = arith.constant 0 : index
      %c0_37 = arith.constant 0 : index
      %95 = vector.load %arg8[%c0_36, %c0_37] : memref<16x128xf32, #tpu.memory_space<vmem>>, vector<16x128xf32>
      tpu.vector_store %arg8[%c0_36, %c0_37], %94 {strides = array<i32>} : memref<16x128xf32, #tpu.memory_space<vmem>>, vector<16x128xf32>,
    } else {
    }
    return
  }
  func.func @transform_0(%arg0: i32, %arg1: memref<3xf32, #tpu.memory_space<smem>>) -> (i32, i32) {
    %c0_i32 = arith.constant 0 : i32
    %c0_i32_0 = arith.constant 0 : i32
    %c0_i32_1 = arith.constant 0 : i32
    return %c0_i32, %c0_i32_0 : i32, i32
  }
  func.func @transform_1(%arg0: i32, %arg1: memref<3xf32, #tpu.memory_space<smem>>) -> (i32, i32) {
    %c0_i32 = arith.constant 0 : i32
    %c0_i32_0 = arith.constant 0 : i32
    %c0_i32_1 = arith.constant 0 : i32
    return %c0_i32, %c0_i32_0 : i32, i32
  }
  func.func @transform_3(%arg0: i32, %arg1: memref<3xf32, #tpu.memory_space<smem>>) -> (i32, i32, i32) {
    %c0_i32 = arith.constant 0 : i32
    %c0_i32_0 = arith.constant 0 : i32
    %c0_i32_1 = arith.constant 0 : i32
    return %arg0, %c0_i32, %c0_i32_0 : i32, i32, i32
  }
  func.func @transform_4(%arg0: i32, %arg1: memref<3xf32, #tpu.memory_space<smem>>) -> (i32, i32, i32) {
    %c0_i32 = arith.constant 0 : i32
    %c0_i32_0 = arith.constant 0 : i32
    %c0_i32_1 = arith.constant 0 : i32
    return %arg0, %c0_i32, %c0_i32_0 : i32, i32, i32
  }
  func.func @transform_5(%arg0: i32, %arg1: memref<3xf32, #tpu.memory_space<smem>>) -> (i32, i32) {
    %c0_i32 = arith.constant 0 : i32
    %c0_i32_0 = arith.constant 0 : i32
    %c0_i32_1 = arith.constant 0 : i32
    return %c0_i32, %c0_i32_0 : i32, i32
  }
  func.func @transform_6(%arg0: i32, %arg1: memref<3xf32, #tpu.memory_space<smem>>) -> (i32, i32) {
    %c0_i32 = arith.constant 0 : i32
    %c0_i32_0 = arith.constant 0 : i32
    %c0_i32_1 = arith.constant 0 : i32
    return %c0_i32, %c0_i32_0 : i32, i32
  }
}

</mosaic_0001>

<llo_original>
// kernel: hyperbolic_jtnn_encoder_forward.1
$region0: #{hyperbolic_jtnn_encoder_forward.1}
  #allocation0 [shape = 'u32[]', space=smem, size = 0x4, offset = 0x4, fixed_abs, tag = 'smem constant byte address 0x4 - core index']
  #allocation1 [shape = 'u32[144,128]{1,0:T(1,128)}', space=vmem, size = 0x12000, scoped, tag = 'internal scratch']
  #allocation2 [shape = 'bf16[16,128]{1,0:T(16,128)(2,1)}', space=vmem, size = 0x1000, scoped, tag = 'scratch operand']
  #allocation3 [shape = 's32[1]{0}', space=sflag, size = 0x4, scoped, tag = 'scratch operand']
  #allocation4 [shape = 's32[1]{0}', space=sflag, size = 0x4, scoped, tag = 'scoped memory for hyperbolic_jtnn_encoder_forward.1']
  #allocation5 [shape = 'u8[512]{0}', space=smem, size = 0x200, scoped, tag = 'prefetched SMEM operand 0']
  #allocation6 [shape = 's32[]', space=sflag, size = 0x4, offset = 0, fixed_abs, tag = 'sflag constant byte address 0x0 - dummy sync flag']
  %s0 = inlined_call_operand.vmem [shape: f32[3], index: 0, kind: input, shape index: {}]
  %s1 = inlined_call_operand.vmem [shape: f32[128,128], index: 1, kind: input, shape index: {}]
  %s2 = inlined_call_operand.vmem [shape: bf16[128,128], index: 2, kind: input, shape index: {}]
  %s3 = inlined_call_operand.vmem [shape: bf16[16,128], index: 3, kind: input, shape index: {}]
  %s4 = inlined_call_operand.vmem [shape: bf16[3,128,128], index: 4, kind: input, shape index: {}]
  %s5 = inlined_call_operand.vmem [shape: f32[3,1,128], index: 5, kind: input, shape index: {}]
  %s6 = inlined_call_operand.vmem [shape: f32[128,128], index: 6, kind: output, shape index: {0}]
  %s7 = inlined_call_operand.vmem [shape: f32[16,128], index: 7, kind: output, shape index: {1}]
  %8 = xla_tuple %s6, %s7
  %s9 = sld [smem:[#allocation0]]
  $region107: #{hyperbolic_jtnn_encoder_forward.1} parent=0
    _
  %s11 = ssub.s32 1, %s9
  %s12 = scalar_select 0, %s11, %s9
  %s13 = sshll.u32 %s0, 4
  %s14 = int_to_ptr.vmem [resolvable:$true] %s13
  %16 = dma.vmem_to_smem %s14, 16, [#allocation5], [#allocation4]
  %17 = dma.done [#allocation4], 16
  %18 = sfence
  loop: start=0, step=1, limit=5
  $region2: #{hyperbolic_jtnn_encoder_forward.1} parent=0 // loop_pre_header
    _
  $region3: #{hyperbolic_jtnn_encoder_forward.1} parent=0 // loop_header
    %s20 = sphi 0, %s24
    %p21 = scmp.ge.s32.totalorder %s20, 5
    %s28 = sphi 0, %s28
    %s30 = sphi 0, %s28
    %s31 = sphi 0, %s30
    %s45 = sphi 0, %s31
    %s49 = sphi 0, %s49
    %s51 = sphi 0, %s49
    %s52 = sphi 0, %s51
    %s66 = sphi 0, %s52
    %s72 = sphi 0, %s74
    %s75 = sphi 0, %s72
    %s76 = sphi 0, %s75
    %s92 = sphi 0, %s76
    %s98 = sphi 0, %s100
    %s101 = sphi 0, %s98
    %s102 = sphi 0, %s101
    %s118 = sphi 0, %s102
    %s122 = sphi 0, %s122
    %s124 = sphi 0, %s122
    %s125 = sphi 0, %s124
    %s139 = sphi 0, %s125
    %s143 = sphi 0, %s143
    %s145 = sphi 0, %s143
    %s146 = sphi 0, %s145
    %s160 = sphi 0, %s146
  $region4: #{hyperbolic_jtnn_encoder_forward.1} parent=0 // loop_header_branch
    %23 = sbr.rel (%p21) target = $region8
  $region5: #{hyperbolic_jtnn_encoder_forward.1} parent=0 // loop_body
    %s25 = ssub.s32 %s20, 1
    %s26 = ssub.s32 %s20, 2
    %s27 = sadd.s32 %s20, 1
    %s29 = sadd.s32 %s28, 1
    %p32 = scmp.eq.s32.totalorder %s20, 2
    %p33 = scmp.ne.s32.totalorder %s28, %s30
    %p34 = scmp.eq.s32.totalorder %s20, 0
    %p35 = por %p33, %p34
    %p36 = scmp.ne.s32.totalorder %s28, %s30
    %p37 = scmp.eq.s32.totalorder %s25, 2
    %p38 = por %p36, %p37
    %p39 = scmp.ne.s32.totalorder %s30, %s31
    %p40 = scmp.eq.s32.totalorder %s25, 0
    %p41 = por %p39, %p40
    %p42 = scmp.ne.s32.totalorder %s30, %s31
    %p43 = scmp.eq.s32.totalorder %s26, 2
    %p44 = por %p42, %p43
    %p46 = scmp.ne.s32.totalorder %s31, %s45
    %p47 = scmp.eq.s32.totalorder %s26, 0
    %p48 = por %p46, %p47
    %s50 = sadd.s32 %s49, 1
    %p53 = scmp.eq.s32.totalorder %s20, 2
    %p54 = scmp.ne.s32.totalorder %s49, %s51
    %p55 = scmp.eq.s32.totalorder %s20, 0
    %p56 = por %p54, %p55
    %p57 = scmp.ne.s32.totalorder %s49, %s51
    %p58 = scmp.eq.s32.totalorder %s25, 2
    %p59 = por %p57, %p58
    %p60 = scmp.ne.s32.totalorder %s51, %s52
    %p61 = scmp.eq.s32.totalorder %s25, 0
    %p62 = por %p60, %p61
    %p63 = scmp.ne.s32.totalorder %s51, %s52
    %p64 = scmp.eq.s32.totalorder %s26, 2
    %p65 = por %p63, %p64
    %p67 = scmp.ne.s32.totalorder %s52, %s66
    %p68 = scmp.eq.s32.totalorder %s26, 0
    %p69 = por %p67, %p68
    %s70 = ssub.s32 %s20, %s27
    %p71 = scmp.eq.s32.totalorder %s70, 0
    %s73 = sadd.s32 %s72, 1
    %s74 = scalar_select %p71, %s72, %s73
    %p77 = pneg %p71
    %p78 = scmp.eq.s32.totalorder %s20, 2
    %p79 = por %p77, %p78
    %p80 = scmp.ne.s32.totalorder %s72, %s75
    %p81 = scmp.eq.s32.totalorder %s20, 0
    %p82 = por %p80, %p81
    %p83 = scmp.ne.s32.totalorder %s72, %s75
    %p84 = scmp.eq.s32.totalorder %s25, 2
    %p85 = por %p83, %p84
    %p86 = scmp.ne.s32.totalorder %s75, %s76
    %p87 = scmp.eq.s32.totalorder %s25, 0
    %p88 = por %p86, %p87
    %p89 = scmp.ne.s32.totalorder %s75, %s76
    %p90 = scmp.eq.s32.totalorder %s26, 2
    %p91 = por %p89, %p90
    %p93 = scmp.ne.s32.totalorder %s76, %s92
    %p94 = scmp.eq.s32.totalorder %s26, 0
    %p95 = por %p93, %p94
    %s96 = ssub.s32 %s20, %s27
    %p97 = scmp.eq.s32.totalorder %s96, 0
    %s99 = sadd.s32 %s98, 1
    %s100 = scalar_select %p97, %s98, %s99
    %p103 = pneg %p97
    %p104 = scmp.eq.s32.totalorder %s20, 2
    %p105 = por %p103, %p104
    %p106 = scmp.ne.s32.totalorder %s98, %s101
    %p107 = scmp.eq.s32.totalorder %s20, 0
    %p108 = por %p106, %p107
    %p109 = scmp.ne.s32.totalorder %s98, %s101
    %p110 = scmp.eq.s32.totalorder %s25, 2
    %p111 = por %p109, %p110
    %p112 = scmp.ne.s32.totalorder %s101, %s102
    %p113 = scmp.eq.s32.totalorder %s25, 0
    %p114 = por %p112, %p113
    %p115 = scmp.ne.s32.totalorder %s101, %s102
    %p116 = scmp.eq.s32.totalorder %s26, 2
    %p117 = por %p115, %p116
    %p119 = scmp.ne.s32.totalorder %s102, %s118
    %p120 = scmp.eq.s32.totalorder %s26, 0
    %p121 = por %p119, %p120
    %s123 = sadd.s32 %s122, 1
    %p126 = scmp.eq.s32.totalorder %s20, 2
    %p127 = scmp.ne.s32.totalorder %s122, %s124
    %p128 = scmp.eq.s32.totalorder %s20, 0
    %p129 = por %p127, %p128
    %p130 = scmp.ne.s32.totalorder %s122, %s124
    %p131 = scmp.eq.s32.totalorder %s25, 2
    %p132 = por %p130, %p131
    %p133 = scmp.ne.s32.totalorder %s124, %s125
    %p134 = scmp.eq.s32.totalorder %s25, 0
    %p135 = por %p133, %p134
    %p136 = scmp.ne.s32.totalorder %s124, %s125
    %p137 = scmp.eq.s32.totalorder %s26, 2
    %p138 = por %p136, %p137
    %p140 = scmp.ne.s32.totalorder %s125, %s139
    %p141 = scmp.eq.s32.totalorder %s26, 0
    %p142 = por %p140, %p141
    %s144 = sadd.s32 %s143, 1
    %p147 = scmp.eq.s32.totalorder %s20, 2
    %p148 = scmp.ne.s32.totalorder %s143, %s145
    %p149 = scmp.eq.s32.totalorder %s20, 0
    %p150 = por %p148, %p149
    %p151 = scmp.ne.s32.totalorder %s143, %s145
    %p152 = scmp.eq.s32.totalorder %s25, 2
    %p153 = por %p151, %p152
    %p154 = scmp.ne.s32.totalorder %s145, %s146
    %p155 = scmp.eq.s32.totalorder %s25, 0
    %p156 = por %p154, %p155
    %p157 = scmp.ne.s32.totalorder %s145, %s146
    %p158 = scmp.eq.s32.totalorder %s26, 2
    %p159 = por %p157, %p158
    %p161 = scmp.ne.s32.totalorder %s146, %s160
    %p162 = scmp.eq.s32.totalorder %s26, 0
    %p163 = por %p161, %p162
    %p164 = scmp.le.s32.totalorder 1, %s20
    %p165 = scmp.lt.s32.totalorder %s20, 4
    %p166 = pnand %p164, %p165
    %p167 = pneg %p166
    // Predicated region
    $region9: #{hyperbolic_jtnn_encoder_forward.1} parent=5 // pred_check
      _
    $region10: #{hyperbolic_jtnn_encoder_forward.1} parent=5 // pred_check_branch
      %169 = sbr.rel (%p166) target = $region12
    $region11: #{hyperbolic_jtnn_encoder_forward.1} parent=5 // pred_region
      %s170 = ssub.s32 %s20, 1
      // Predicated region
      $region13: #{hyperbolic_jtnn_encoder_forward.1} parent=11 // pred_check
        %p171 = pneg %p41
      $region14: #{hyperbolic_jtnn_encoder_forward.1} parent=11 // pred_check_branch
        %173 = sbr.rel (%p171) target = $region16
      $region15: #{hyperbolic_jtnn_encoder_forward.1} parent=11 // pred_region
        _
      $region16: #{hyperbolic_jtnn_encoder_forward.1} parent=11 // pred_fallthru
        _
      // Predicated region
      $region17: #{hyperbolic_jtnn_encoder_forward.1} parent=11 // pred_check
        %p174 = pneg %p62
      $region18: #{hyperbolic_jtnn_encoder_forward.1} parent=11 // pred_check_branch
        %176 = sbr.rel (%p174) target = $region20
      $region19: #{hyperbolic_jtnn_encoder_forward.1} parent=11 // pred_region
        _
      $region20: #{hyperbolic_jtnn_encoder_forward.1} parent=11 // pred_fallthru
        _
    $region12: #{hyperbolic_jtnn_encoder_forward.1} parent=5 // pred_fallthru
      _
    %p177 = scmp.lt.s32.totalorder %s20, 3
    // Predicated region
    $region21: #{hyperbolic_jtnn_encoder_forward.1} parent=5 // pred_check
      %p178 = pneg %p177
    $region22: #{hyperbolic_jtnn_encoder_forward.1} parent=5 // pred_check_branch
      %180 = sbr.rel (%p178) target = $region24
    $region23: #{hyperbolic_jtnn_encoder_forward.1} parent=5 // pred_region
      // Predicated region
      $region25: #{hyperbolic_jtnn_encoder_forward.1} parent=23 // pred_check
        %p181 = pneg %p82
      $region26: #{hyperbolic_jtnn_encoder_forward.1} parent=23 // pred_check_branch
        %183 = sbr.rel (%p181) target = $region28
      $region27: #{hyperbolic_jtnn_encoder_forward.1} parent=23 // pred_region
        %p184 = scmp.lt.s32.totalorder %s20, 2
        %s185 = scalar_select %p184, %s20, 2
        %s186 = smul.addr %s185, 16
        %s187 = smul.addr %s186, 4
        %s188 = scalar_lea.vmem %s4, %s187
      $region28: #{hyperbolic_jtnn_encoder_forward.1} parent=23 // pred_fallthru
        _
      // Predicated region
      $region29: #{hyperbolic_jtnn_encoder_forward.1} parent=23 // pred_check
        %p189 = pneg %p108
      $region30: #{hyperbolic_jtnn_encoder_forward.1} parent=23 // pred_check_branch
        %191 = sbr.rel (%p189) target = $region32
      $region31: #{hyperbolic_jtnn_encoder_forward.1} parent=23 // pred_region
        %p192 = scmp.lt.s32.totalorder %s20, 2
        %s193 = scalar_select %p192, %s20, 2
        %s194 = scalar_lea.vmem %s5, %s193
      $region32: #{hyperbolic_jtnn_encoder_forward.1} parent=23 // pred_fallthru
        _
    $region24: #{hyperbolic_jtnn_encoder_forward.1} parent=5 // pred_fallthru
      _
    %p195 = scmp.le.s32.totalorder 1, %s20
    %p196 = scmp.lt.s32.totalorder %s20, 4
    %p197 = pnand %p195, %p196
    %p198 = pneg %p197
    // Predicated region
    $region33: #{hyperbolic_jtnn_encoder_forward.1} parent=5 // pred_check
      _
    $region34: #{hyperbolic_jtnn_encoder_forward.1} parent=5 // pred_check_branch
      %200 = sbr.rel (%p197) target = $region36
    $region35: #{hyperbolic_jtnn_encoder_forward.1} parent=5 // pred_region
      %s201 = ssub.s32 %s20, 1
      %p202 = pneg %p41
      %p203 = pneg %p38
      %p204 = pneg %p62
      %p205 = pneg %p59
      %p206 = scmp.lt.s32.totalorder %s25, 2
      %s207 = scalar_select %p206, %s25, 2
      %s208 = smul.addr %s207, 16
      %s209 = smul.addr %s208, 4
      %s210 = scalar_lea.vmem %s4, %s209
      %p211 = pneg %p88
      %p212 = pneg %p85
      %p213 = scmp.lt.s32.totalorder %s25, 2
      %s214 = scalar_select %p213, %s25, 2
      %s215 = scalar_lea.vmem %s5, %s214
      %p216 = pneg %p114
      %p217 = pneg %p111
      %p218 = pneg %p135
      %p219 = pneg %p132
      %p220 = pneg %p156
      %p221 = pneg %p153
      %p222 = scmp.lt.s32.totalorder %s25, 2
      %s223 = scalar_select %p222, %s25, 2
      %s224 = smul.addr %s223, 16
      %s225 = smul.addr %s224, 4
      %s226 = scalar_lea.vmem %s4, %s225
      %p227 = scmp.lt.s32.totalorder %s25, 2
      %s228 = scalar_select %p227, %s25, 2
      %s229 = scalar_lea.vmem %s5, %s228
      %p231 = scmp.eq.s32.totalorder %s25, 0
      // Predicated region
      $region37: #{hyperbolic_jtnn_encoder_forward.1} parent=35 // pred_check
        %p232 = pneg %p231
      $region38: #{hyperbolic_jtnn_encoder_forward.1} parent=35 // pred_check_branch
        %234 = sbr.rel (%p232) target = $region40
      $region39: #{hyperbolic_jtnn_encoder_forward.1} parent=35 // pred_region
        %v235 = vld [vmem:[%s1] sm:$0xff]
        %v236 = vld [vmem:[%s1 + $0x8] sm:$0xff]
        %v237 = vld [vmem:[%s1 + $0x10] sm:$0xff]
        %v238 = vld [vmem:[%s1 + $0x18] sm:$0xff]
        %v239 = vld [vmem:[%s1 + $0x20] sm:$0xff]
        %v240 = vld [vmem:[%s1 + $0x28] sm:$0xff]
        %v241 = vld [vmem:[%s1 + $0x30] sm:$0xff]
        %v242 = vld [vmem:[%s1 + $0x38] sm:$0xff]
        %v243 = vld [vmem:[%s1 + $0x40] sm:$0xff]
        %v244 = vld [vmem:[%s1 + $0x48] sm:$0xff]
        %v245 = vld [vmem:[%s1 + $0x50] sm:$0xff]
        %v246 = vld [vmem:[%s1 + $0x58] sm:$0xff]
        %v247 = vld [vmem:[%s1 + $0x60] sm:$0xff]
        %v248 = vld [vmem:[%s1 + $0x68] sm:$0xff]
        %v249 = vld [vmem:[%s1 + $0x70] sm:$0xff]
        %v250 = vld [vmem:[%s1 + $0x78] sm:$0xff]
        %251 = vst [vmem:[%s6] sm:$0xff] %v235
        %252 = vst [vmem:[%s6 + $0x8] sm:$0xff] %v236
        %253 = vst [vmem:[%s6 + $0x10] sm:$0xff] %v237
        %254 = vst [vmem:[%s6 + $0x18] sm:$0xff] %v238
        %255 = vst [vmem:[%s6 + $0x20] sm:$0xff] %v239
        %256 = vst [vmem:[%s6 + $0x28] sm:$0xff] %v240
        %257 = vst [vmem:[%s6 + $0x30] sm:$0xff] %v241
        %258 = vst [vmem:[%s6 + $0x38] sm:$0xff] %v242
        %259 = vst [vmem:[%s6 + $0x40] sm:$0xff] %v243
        %260 = vst [vmem:[%s6 + $0x48] sm:$0xff] %v244
        %261 = vst [vmem:[%s6 + $0x50] sm:$0xff] %v245
        %262 = vst [vmem:[%s6 + $0x58] sm:$0xff] %v246
        %263 = vst [vmem:[%s6 + $0x60] sm:$0xff] %v247
        %264 = vst [vmem:[%s6 + $0x68] sm:$0xff] %v248
        %265 = vst [vmem:[%s6 + $0x70] sm:$0xff] %v249
        %266 = vst [vmem:[%s6 + $0x78] sm:$0xff] %v250
      $region40: #{hyperbolic_jtnn_encoder_forward.1} parent=35 // pred_fallthru
        _
      %p267 = scmp.eq.s32.totalorder %s25, 1
      // Predicated region
      $region41: #{hyperbolic_jtnn_encoder_forward.1} parent=35 // pred_check
        %p268 = pneg %p267
      $region42: #{hyperbolic_jtnn_encoder_forward.1} parent=35 // pred_check_branch
        %270 = sbr.rel (%p268) target = $region44
      $region43: #{hyperbolic_jtnn_encoder_forward.1} parent=35 // pred_region
        %p272 = scmp.lt.u32.totalorder 8, 8
        %p273 = pneg %p272
        // Predicated region
        $region45: #{hyperbolic_jtnn_encoder_forward.1} parent=43 // pred_check
          _
        $region46: #{hyperbolic_jtnn_encoder_forward.1} parent=43 // pred_check_branch
          %275 = sbr.rel (%p272) target = $region48
        $region47: #{hyperbolic_jtnn_encoder_forward.1} parent=43 // pred_region
          %s290 = sand.u32 8, 7
          %p291 = scmp.eq.s32.totalorder %s290, 0
          // Predicated region
          $region60: #{hyperbolic_jtnn_encoder_forward.1} parent=47 // pred_check
            %p292 = pneg %p291
          $region61: #{hyperbolic_jtnn_encoder_forward.1} parent=47 // pred_check_branch
            %294 = sbr.rel (%p292) target = $region63
          $region62: #{hyperbolic_jtnn_encoder_forward.1} parent=47 // pred_region
            loop: start=0, step=1, limit=1
            $region64: #{hyperbolic_jtnn_encoder_forward.1} parent=62 // loop_pre_header
              _
            $region65: #{hyperbolic_jtnn_encoder_forward.1} parent=62 // loop_header
              %s296 = sphi 0, %s300
              %p297 = scmp.ge.s32.totalorder %s296, 1
              %s301 = sphi %s3, %s3
              %s302 = sphi [#allocation2], [#allocation2]
            $region66: #{hyperbolic_jtnn_encoder_forward.1} parent=62 // loop_header_branch
              %299 = sbr.rel (%p297) target = $region70
            $region67: #{hyperbolic_jtnn_encoder_forward.1} parent=62 // loop_body
              %v303 = vld [vmem:[%s301] sm:$0xff]
              %304 = vst [vmem:[%s302] sm:$0xff] %v303
            $region68: #{hyperbolic_jtnn_encoder_forward.1} parent=62 // loop_footer
              %s300 = sadd.s32 1, %s296
            $region69: #{hyperbolic_jtnn_encoder_forward.1} parent=62 // loop_footer_branch
              %295 = sbr.rel target = $region65
            $region70: #{hyperbolic_jtnn_encoder_forward.1} parent=62 // loop_exit
              _
          $region63: #{hyperbolic_jtnn_encoder_forward.1} parent=47 // pred_fallthru
            _
          %p305 = pneg %p291
          // Predicated region
          $region71: #{hyperbolic_jtnn_encoder_forward.1} parent=47 // pred_check
            _
          $region72: #{hyperbolic_jtnn_encoder_forward.1} parent=47 // pred_check_branch
            %307 = sbr.rel (%p291) target = $region74
          $region73: #{hyperbolic_jtnn_encoder_forward.1} parent=47 // pred_region
            %s308 = sand.u32 8, 7
          $region74: #{hyperbolic_jtnn_encoder_forward.1} parent=47 // pred_fallthru
            _
        $region48: #{hyperbolic_jtnn_encoder_forward.1} parent=43 // pred_fallthru
          _
        // Predicated region
        $region49: #{hyperbolic_jtnn_encoder_forward.1} parent=43 // pred_check
          %p276 = pneg %p272
        $region50: #{hyperbolic_jtnn_encoder_forward.1} parent=43 // pred_check_branch
          %278 = sbr.rel (%p276) target = $region52
        $region51: #{hyperbolic_jtnn_encoder_forward.1} parent=43 // pred_region
          %s279 = sshllo.u32 0, 8
          loop: start=0, step=1, limit=1
          $region53: #{hyperbolic_jtnn_encoder_forward.1} parent=51 // loop_pre_header
            _
          $region54: #{hyperbolic_jtnn_encoder_forward.1} parent=51 // loop_header
            %s281 = sphi 0, %s285
            %p282 = scmp.ge.s32.totalorder %s281, 1
            %s286 = sphi %s3, %s3
            %s287 = sphi [#allocation2], [#allocation2]
          $region55: #{hyperbolic_jtnn_encoder_forward.1} parent=51 // loop_header_branch
            %284 = sbr.rel (%p282) target = $region59
          $region56: #{hyperbolic_jtnn_encoder_forward.1} parent=51 // loop_body
            %v288 = vld [vmem:[%s286] sm:%s279]
            %289 = vst [vmem:[%s287] sm:%s279] %v288
          $region57: #{hyperbolic_jtnn_encoder_forward.1} parent=51 // loop_footer
            %s285 = sadd.s32 1, %s281
          $region58: #{hyperbolic_jtnn_encoder_forward.1} parent=51 // loop_footer_branch
            %280 = sbr.rel target = $region54
          $region59: #{hyperbolic_jtnn_encoder_forward.1} parent=51 // loop_exit
            _
        $region52: #{hyperbolic_jtnn_encoder_forward.1} parent=43 // pred_fallthru
          _
        // Predicated region
        $region75: #{hyperbolic_jtnn_encoder_forward.1} parent=43 // pred_check
          _
        $region76: #{hyperbolic_jtnn_encoder_forward.1} parent=43 // pred_check_branch
          %311 = sbr.rel (0) target = $region78
        $region77: #{hyperbolic_jtnn_encoder_forward.1} parent=43 // pred_region
          %312 = vsyncadd [#allocation3], 128
        $region78: #{hyperbolic_jtnn_encoder_forward.1} parent=43 // pred_fallthru
          _
      $region44: #{hyperbolic_jtnn_encoder_forward.1} parent=35 // pred_fallthru
        _
      %v313 = vld [vmem:[%s6] sm:$0xff]
      %v314 = vld [vmem:[%s6 + $0x8] sm:$0xff]
      %v315 = vld [vmem:[%s6 + $0x10] sm:$0xff]
      %v316 = vld [vmem:[%s6 + $0x18] sm:$0xff]
      %v317 = vld [vmem:[%s6 + $0x20] sm:$0xff]
      %v318 = vld [vmem:[%s6 + $0x28] sm:$0xff]
      %v319 = vld [vmem:[%s6 + $0x30] sm:$0xff]
      %v320 = vld [vmem:[%s6 + $0x38] sm:$0xff]
      %v321 = vld [vmem:[%s6 + $0x40] sm:$0xff]
      %v322 = vld [vmem:[%s6 + $0x48] sm:$0xff]
      %v323 = vld [vmem:[%s6 + $0x50] sm:$0xff]
      %v324 = vld [vmem:[%s6 + $0x58] sm:$0xff]
      %v325 = vld [vmem:[%s6 + $0x60] sm:$0xff]
      %v326 = vld [vmem:[%s6 + $0x68] sm:$0xff]
      %v327 = vld [vmem:[%s6 + $0x70] sm:$0xff]
      %v328 = vld [vmem:[%s6 + $0x78] sm:$0xff]
      %v329 = vpack.c.bf16 %v314, %v313
      %v330 = vpack.c.bf16 %v316, %v315
      %v331 = vpack.c.bf16 %v318, %v317
      %v332 = vpack.c.bf16 %v320, %v319
      %v333 = vpack.c.bf16 %v322, %v321
      %v334 = vpack.c.bf16 %v324, %v323
      %v335 = vpack.c.bf16 %v326, %v325
      %v336 = vpack.c.bf16 %v328, %v327
      %v337 = vld [vmem:[%s226] sm:$0xf]
      %v338 = vld [vmem:[%s226 + $0x4] sm:$0xf]
      %v339 = vld [vmem:[%s226 + $0x8] sm:$0xf]
      %v340 = vld [vmem:[%s226 + $0xc] sm:$0xf]
      %v341 = vld [vmem:[%s226 + $0x10] sm:$0xf]
      %v342 = vld [vmem:[%s226 + $0x14] sm:$0xf]
      %v343 = vld [vmem:[%s226 + $0x18] sm:$0xf]
      %v344 = vld [vmem:[%s226 + $0x1c] sm:$0xf]
      %v345 = vld [vmem:[%s226 + $0x20] sm:$0xf]
      %v346 = vld [vmem:[%s226 + $0x24] sm:$0xf]
      %v347 = vld [vmem:[%s226 + $0x28] sm:$0xf]
      %v348 = vld [vmem:[%s226 + $0x2c] sm:$0xf]
      %v349 = vld [vmem:[%s226 + $0x30] sm:$0xf]
      %v350 = vld [vmem:[%s226 + $0x34] sm:$0xf]
      %v351 = vld [vmem:[%s226 + $0x38] sm:$0xf]
      %v352 = vld [vmem:[%s226 + $0x3c] sm:$0xf]
      %v353 = vld [vmem:[%s229] sm:$0x1]
      %v355 = vlaneseq
      %v356 = vshrl.u32 %v355, 7
      %v357 = vsub.s32 0, %v356
      %v358 = vrot.slane %v353, %v357
      %v376 = vunpack.c.l.b16 %v337
      %v377 = vunpack.c.l.b16 %v338
      %v378 = vunpack.c.l.b16 %v339
      %v379 = vunpack.c.l.b16 %v340
      %v380 = vunpack.c.l.b16 %v341
      %v381 = vunpack.c.l.b16 %v342
      %v382 = vunpack.c.l.b16 %v343
      %v383 = vunpack.c.l.b16 %v344
      %v384 = vunpack.c.l.b16 %v345
      %v385 = vunpack.c.l.b16 %v346
      %v386 = vunpack.c.l.b16 %v347
      %v387 = vunpack.c.l.b16 %v348
      %v388 = vunpack.c.l.b16 %v349
      %v389 = vunpack.c.l.b16 %v350
      %v390 = vunpack.c.l.b16 %v351
      %v391 = vunpack.c.l.b16 %v352
      %v392 = vpack.c.b16 %v377, %v376
      %v393 = vpack.c.b16 %v379, %v378
      %v394 = vpack.c.b16 %v381, %v380
      %v395 = vpack.c.b16 %v383, %v382
      %v396 = vpack.c.b16 %v385, %v384
      %v397 = vpack.c.b16 %v387, %v386
      %v398 = vpack.c.b16 %v389, %v388
      %v399 = vpack.c.b16 %v391, %v390
      %408 = vmatprep.subr.bf16.mxu0 0
      %409 = vmatpush1.bf16.msra.mxu0 %v392
      %410 = vmatprep.subr.bf16.mxu0 0
      %411 = vmatpush1.bf16.msra.mxu0 %v393
      %412 = vmatprep.subr.bf16.mxu0 0
      %413 = vmatpush1.bf16.msra.mxu0 %v394
      %414 = vmatprep.subr.bf16.mxu0 0
      %415 = vmatpush1.bf16.msra.mxu0 %v395
      %416 = vmatprep.subr.bf16.mxu0 0
      %417 = vmatpush1.bf16.msra.mxu0 %v396
      %418 = vmatprep.subr.bf16.mxu0 0
      %419 = vmatpush1.bf16.msra.mxu0 %v397
      %420 = vmatprep.subr.bf16.mxu0 0
      %421 = vmatpush1.bf16.msra.mxu0 %v398
      %422 = vmatprep.subr.bf16.mxu0 0
      %423 = vmatpush1.bf16.msra.mxu0 %v399
      %424 = vmatprep.subr.bf16.mxu0 0
      %425 = vmatpush1.bf16.msra.mxu0 0
      %426 = vmatprep.subr.bf16.mxu0 0
      %427 = vmatpush1.bf16.msra.mxu0 0
      %428 = vmatprep.subr.bf16.mxu0 0
      %429 = vmatpush1.bf16.msra.mxu0 0
      %430 = vmatprep.subr.bf16.mxu0 0
      %431 = vmatpush1.bf16.msra.mxu0 0
      %432 = vmatprep.subr.bf16.mxu0 0
      %433 = vmatpush1.bf16.msra.mxu0 0
      %434 = vmatprep.subr.bf16.mxu0 0
      %435 = vmatpush1.bf16.msra.mxu0 0
      %436 = vmatprep.subr.bf16.mxu0 0
      %437 = vmatpush1.bf16.msra.mxu0 0
      %438 = vmatprep.subr.bf16.mxu0 0
      %439 = vmatpush1.bf16.msra.mxu0 0
      %440 = vmatprep.mubr.bf16.mxu0 0
      %441 = vmatmul.mubr.bf16.gmra.mrb[0].mxu0 %v329
      %v442 = vpop.f32.mrb[0].mxu0
      %v443 = vadd.f32 %v358, %v442
      %v444 = vpop.f32.mrb[0].mxu0
      %v445 = vpop.f32.mrb[0].mxu0
      %v446 = vadd.f32 %v358, %v445
      %v447 = vpop.f32.mrb[0].mxu0
      %448 = vmatprep.mubr.bf16.mxu0 0
      %449 = vmatmul.mubr.bf16.gmra.mrb[0].mxu0 %v330
      %v450 = vpop.f32.mrb[0].mxu0
      %v451 = vadd.f32 %v358, %v450
      %v452 = vpop.f32.mrb[0].mxu0
      %v453 = vpop.f32.mrb[0].mxu0
      %v454 = vadd.f32 %v358, %v453
      %v455 = vpop.f32.mrb[0].mxu0
      %456 = vmatprep.mubr.bf16.mxu0 0
      %457 = vmatmul.mubr.bf16.gmra.mrb[0].mxu0 %v331
      %v458 = vpop.f32.mrb[0].mxu0
      %v459 = vadd.f32 %v358, %v458
      %v460 = vpop.f32.mrb[0].mxu0
      %v461 = vpop.f32.mrb[0].mxu0
      %v462 = vadd.f32 %v358, %v461
      %v463 = vpop.f32.mrb[0].mxu0
      %464 = vmatprep.mubr.bf16.mxu0 0
      %465 = vmatmul.mubr.bf16.gmra.mrb[0].mxu0 %v332
      %v466 = vpop.f32.mrb[0].mxu0
      %v467 = vadd.f32 %v358, %v466
      %v468 = vpop.f32.mrb[0].mxu0
      %v469 = vpop.f32.mrb[0].mxu0
      %v470 = vadd.f32 %v358, %v469
      %v471 = vpop.f32.mrb[0].mxu0
      %472 = vmatprep.mubr.bf16.mxu0 0
      %473 = vmatmul.mubr.bf16.gmra.mrb[0].mxu0 %v333
      %v474 = vpop.f32.mrb[0].mxu0
      %v475 = vadd.f32 %v358, %v474
      %v476 = vpop.f32.mrb[0].mxu0
      %v477 = vpop.f32.mrb[0].mxu0
      %v478 = vadd.f32 %v358, %v477
      %v479 = vpop.f32.mrb[0].mxu0
      %480 = vmatprep.mubr.bf16.mxu0 0
      %481 = vmatmul.mubr.bf16.gmra.mrb[0].mxu0 %v334
      %v482 = vpop.f32.mrb[0].mxu0
      %v483 = vadd.f32 %v358, %v482
      %v484 = vpop.f32.mrb[0].mxu0
      %v485 = vpop.f32.mrb[0].mxu0
      %v486 = vadd.f32 %v358, %v485
      %v487 = vpop.f32.mrb[0].mxu0
      %488 = vmatprep.mubr.bf16.mxu0 0
      %489 = vmatmul.mubr.bf16.gmra.mrb[0].mxu0 %v335
      %v490 = vpop.f32.mrb[0].mxu0
      %v491 = vadd.f32 %v358, %v490
      %v492 = vpop.f32.mrb[0].mxu0
      %v493 = vpop.f32.mrb[0].mxu0
      %v494 = vadd.f32 %v358, %v493
      %v495 = vpop.f32.mrb[0].mxu0
      %496 = vmatprep.mubr.bf16.mxu0 0
      %497 = vmatmul.mubr.bf16.gmra.mrb[0].mxu0 %v336
      %v498 = vpop.f32.mrb[0].mxu0
      %v499 = vadd.f32 %v358, %v498
      %v500 = vpop.f32.mrb[0].mxu0
      %v501 = vpop.f32.mrb[0].mxu0
      %v502 = vadd.f32 %v358, %v501
      %v503 = vpop.f32.mrb[0].mxu0
      %504 = vdwg.mxu0
      %v505 = vlaneseq
      %v506 = vand.u32 %v505, 127
      %vm507 = vcmp.eq.s32.totalorder %v506, 0
      %v508 = vmul.f32 %v443, %v443
      %v509 = vmul.f32 %v446, %v446
      %v510 = vmul.f32 %v451, %v451
      %v511 = vmul.f32 %v454, %v454
      %v512 = vmul.f32 %v459, %v459
      %v513 = vmul.f32 %v462, %v462
      %v514 = vmul.f32 %v467, %v467
      %v515 = vmul.f32 %v470, %v470
      %v516 = vmul.f32 %v475, %v475
      %v517 = vmul.f32 %v478, %v478
      %v518 = vmul.f32 %v483, %v483
      %v519 = vmul.f32 %v486, %v486
      %v520 = vmul.f32 %v491, %v491
      %v521 = vmul.f32 %v494, %v494
      %v522 = vmul.f32 %v499, %v499
      %v523 = vmul.f32 %v502, %v502
      %v524 = vsel %vm507, 0.0, %v508
      %v525 = vsel %vm507, 0.0, %v509
      %v526 = vsel %vm507, 0.0, %v510
      %v527 = vsel %vm507, 0.0, %v511
      %v528 = vsel %vm507, 0.0, %v512
      %v529 = vsel %vm507, 0.0, %v513
      %v530 = vsel %vm507, 0.0, %v514
      %v531 = vsel %vm507, 0.0, %v515
      %v532 = vsel %vm507, 0.0, %v516
      %v533 = vsel %vm507, 0.0, %v517
      %v534 = vsel %vm507, 0.0, %v518
      %v535 = vsel %vm507, 0.0, %v519
      %v536 = vsel %vm507, 0.0, %v520
      %v537 = vsel %vm507, 0.0, %v521
      %v538 = vsel %vm507, 0.0, %v522
      %v539 = vsel %vm507, 0.0, %v523
      %540 = vadd.xlane.f32.xlu0 %v524
      %v541 = vpop.xlane.xlu0 %540
      %542 = vadd.xlane.f32.xlu0 %v525
      %v543 = vpop.xlane.xlu0 %542
      %544 = vadd.xlane.f32.xlu0 %v526
      %v545 = vpop.xlane.xlu0 %544
      %546 = vadd.xlane.f32.xlu0 %v527
      %v547 = vpop.xlane.xlu0 %546
      %548 = vadd.xlane.f32.xlu0 %v528
      %v549 = vpop.xlane.xlu0 %548
      %550 = vadd.xlane.f32.xlu0 %v529
      %v551 = vpop.xlane.xlu0 %550
      %552 = vadd.xlane.f32.xlu0 %v530
      %v553 = vpop.xlane.xlu0 %552
      %554 = vadd.xlane.f32.xlu0 %v531
      %v555 = vpop.xlane.xlu0 %554
      %556 = vadd.xlane.f32.xlu0 %v532
      %v557 = vpop.xlane.xlu0 %556
      %558 = vadd.xlane.f32.xlu0 %v533
      %v559 = vpop.xlane.xlu0 %558
      %560 = vadd.xlane.f32.xlu0 %v534
      %v561 = vpop.xlane.xlu0 %560
      %562 = vadd.xlane.f32.xlu0 %v535
      %v563 = vpop.xlane.xlu0 %562
      %564 = vadd.xlane.f32.xlu0 %v536
      %v565 = vpop.xlane.xlu0 %564
      %566 = vadd.xlane.f32.xlu0 %v537
      %v567 = vpop.xlane.xlu0 %566
      %568 = vadd.xlane.f32.xlu0 %v538
      %v569 = vpop.xlane.xlu0 %568
      %570 = vadd.xlane.f32.xlu0 %v539
      %v571 = vpop.xlane.xlu0 %570
      %v572 = vmax.f32 %v541, 1e-08
      %v573 = vmax.f32 %v543, 1e-08
      %v574 = vmax.f32 %v545, 1e-08
      %v575 = vmax.f32 %v547, 1e-08
      %v576 = vmax.f32 %v549, 1e-08
      %v577 = vmax.f32 %v551, 1e-08
      %v578 = vmax.f32 %v553, 1e-08
      %v579 = vmax.f32 %v555, 1e-08
      %v580 = vmax.f32 %v557, 1e-08
      %v581 = vmax.f32 %v559, 1e-08
      %v582 = vmax.f32 %v561, 1e-08
      %v583 = vmax.f32 %v563, 1e-08
      %v584 = vmax.f32 %v565, 1e-08
      %v585 = vmax.f32 %v567, 1e-08
      %v586 = vmax.f32 %v569, 1e-08
      %v587 = vmax.f32 %v571, 1e-08
      %v588 = vxor.u32 %v443, 2147483648
      %v589 = vxor.u32 %v446, 2147483648
      %v590 = vxor.u32 %v451, 2147483648
      %v591 = vxor.u32 %v454, 2147483648
      %v592 = vxor.u32 %v459, 2147483648
      %v593 = vxor.u32 %v462, 2147483648
      %v594 = vxor.u32 %v467, 2147483648
      %v595 = vxor.u32 %v470, 2147483648
      %v596 = vxor.u32 %v475, 2147483648
      %v597 = vxor.u32 %v478, 2147483648
      %v598 = vxor.u32 %v483, 2147483648
      %v599 = vxor.u32 %v486, 2147483648
      %v600 = vxor.u32 %v491, 2147483648
      %v601 = vxor.u32 %v494, 2147483648
      %v602 = vxor.u32 %v499, 2147483648
      %v603 = vxor.u32 %v502, 2147483648
      %v604 = vmul.f32 %v588, 1.442695
      %v605 = vpow.pop %v604
      %v606 = vmul.f32 %v589, 1.442695
      %v607 = vpow.pop %v606
      %v608 = vmul.f32 %v590, 1.442695
      %v609 = vpow.pop %v608
      %v610 = vmul.f32 %v591, 1.442695
      %v611 = vpow.pop %v610
      %v612 = vmul.f32 %v592, 1.442695
      %v613 = vpow.pop %v612
      %v614 = vmul.f32 %v593, 1.442695
      %v615 = vpow.pop %v614
      %v616 = vmul.f32 %v594, 1.442695
      %v617 = vpow.pop %v616
      %v618 = vmul.f32 %v595, 1.442695
      %v619 = vpow.pop %v618
      %v620 = vmul.f32 %v596, 1.442695
      %v621 = vpow.pop %v620
      %v622 = vmul.f32 %v597, 1.442695
      %v623 = vpow.pop %v622
      %v624 = vmul.f32 %v598, 1.442695
      %v625 = vpow.pop %v624
      %v626 = vmul.f32 %v599, 1.442695
      %v627 = vpow.pop %v626
      %v628 = vmul.f32 %v600, 1.442695
      %v629 = vpow.pop %v628
      %v630 = vmul.f32 %v601, 1.442695
      %v631 = vpow.pop %v630
      %v632 = vmul.f32 %v602, 1.442695
      %v633 = vpow.pop %v632
      %v634 = vmul.f32 %v603, 1.442695
      %v635 = vpow.pop %v634
      %v636 = vadd.f32 %v605, 1.0
      %v637 = vadd.f32 %v607, 1.0
      %v638 = vadd.f32 %v609, 1.0
      %v639 = vadd.f32 %v611, 1.0
      %v640 = vadd.f32 %v613, 1.0
      %v641 = vadd.f32 %v615, 1.0
      %v642 = vadd.f32 %v617, 1.0
      %v643 = vadd.f32 %v619, 1.0
      %v644 = vadd.f32 %v621, 1.0
      %v645 = vadd.f32 %v623, 1.0
      %v646 = vadd.f32 %v625, 1.0
      %v647 = vadd.f32 %v627, 1.0
      %v648 = vadd.f32 %v629, 1.0
      %v649 = vadd.f32 %v631, 1.0
      %v650 = vadd.f32 %v633, 1.0
      %v651 = vadd.f32 %v635, 1.0
      %v652 = vrcp.pop %v636
      %v653 = vmul.f32 1.0, %v652
      %v654 = vrcp.pop %v637
      %v655 = vmul.f32 1.0, %v654
      %v656 = vrcp.pop %v638
      %v657 = vmul.f32 1.0, %v656
      %v658 = vrcp.pop %v639
      %v659 = vmul.f32 1.0, %v658
      %v660 = vrcp.pop %v640
      %v661 = vmul.f32 1.0, %v660
      %v662 = vrcp.pop %v641
      %v663 = vmul.f32 1.0, %v662
      %v664 = vrcp.pop %v642
      %v665 = vmul.f32 1.0, %v664
      %v666 = vrcp.pop %v643
      %v667 = vmul.f32 1.0, %v666
      %v668 = vrcp.pop %v644
      %v669 = vmul.f32 1.0, %v668
      %v670 = vrcp.pop %v645
      %v671 = vmul.f32 1.0, %v670
      %v672 = vrcp.pop %v646
      %v673 = vmul.f32 1.0, %v672
      %v674 = vrcp.pop %v647
      %v675 = vmul.f32 1.0, %v674
      %v676 = vrcp.pop %v648
      %v677 = vmul.f32 1.0, %v676
      %v678 = vrcp.pop %v649
      %v679 = vmul.f32 1.0, %v678
      %v680 = vrcp.pop %v650
      %v681 = vmul.f32 1.0, %v680
      %v682 = vrcp.pop %v651
      %v683 = vmul.f32 1.0, %v682
      %s684 = sld [smem:[#allocation5 + %s25]]
      %v685 = vstv %s684
      %v686 = vmul.f32 %v653, %v685
      %v687 = vmul.f32 %v655, %v685
      %v688 = vmul.f32 %v657, %v685
      %v689 = vmul.f32 %v659, %v685
      %v690 = vmul.f32 %v661, %v685
      %v691 = vmul.f32 %v663, %v685
      %v692 = vmul.f32 %v665, %v685
      %v693 = vmul.f32 %v667, %v685
      %v694 = vmul.f32 %v669, %v685
      %v695 = vmul.f32 %v671, %v685
      %v696 = vmul.f32 %v673, %v685
      %v697 = vmul.f32 %v675, %v685
      %v698 = vmul.f32 %v677, %v685
      %v699 = vmul.f32 %v679, %v685
      %v700 = vmul.f32 %v681, %v685
      %v701 = vmul.f32 %v683, %v685
      %v702 = vadd.f32 %v686, 1.1
      %v703 = vadd.f32 %v687, 1.1
      %v704 = vadd.f32 %v688, 1.1
      %v705 = vadd.f32 %v689, 1.1
      %v706 = vadd.f32 %v690, 1.1
      %v707 = vadd.f32 %v691, 1.1
      %v708 = vadd.f32 %v692, 1.1
      %v709 = vadd.f32 %v693, 1.1
      %v710 = vadd.f32 %v694, 1.1
      %v711 = vadd.f32 %v695, 1.1
      %v712 = vadd.f32 %v696, 1.1
      %v713 = vadd.f32 %v697, 1.1
      %v714 = vadd.f32 %v698, 1.1
      %v715 = vadd.f32 %v699, 1.1
      %v716 = vadd.f32 %v700, 1.1
      %v717 = vadd.f32 %v701, 1.1
      %v718 = vmul.f32 %v702, %v702
      %v719 = vmul.f32 %v703, %v703
      %v720 = vmul.f32 %v704, %v704
      %v721 = vmul.f32 %v705, %v705
      %v722 = vmul.f32 %v706, %v706
      %v723 = vmul.f32 %v707, %v707
      %v724 = vmul.f32 %v708, %v708
      %v725 = vmul.f32 %v709, %v709
      %v726 = vmul.f32 %v710, %v710
      %v727 = vmul.f32 %v711, %v711
      %v728 = vmul.f32 %v712, %v712
      %v729 = vmul.f32 %v713, %v713
      %v730 = vmul.f32 %v714, %v714
      %v731 = vmul.f32 %v715, %v715
      %v732 = vmul.f32 %v716, %v716
      %v733 = vmul.f32 %v717, %v717
      %v734 = vsub.f32 %v718, 1.0
      %v735 = vsub.f32 %v719, 1.0
      %v736 = vsub.f32 %v720, 1.0
      %v737 = vsub.f32 %v721, 1.0
      %v738 = vsub.f32 %v722, 1.0
      %v739 = vsub.f32 %v723, 1.0
      %v740 = vsub.f32 %v724, 1.0
      %v741 = vsub.f32 %v725, 1.0
      %v742 = vsub.f32 %v726, 1.0
      %v743 = vsub.f32 %v727, 1.0
      %v744 = vsub.f32 %v728, 1.0
      %v745 = vsub.f32 %v729, 1.0
      %v746 = vsub.f32 %v730, 1.0
      %v747 = vsub.f32 %v731, 1.0
      %v748 = vsub.f32 %v732, 1.0
      %v749 = vsub.f32 %v733, 1.0
      %v750 = vrcp.pop %v572
      %v751 = vmul.f32 %v734, %v750
      %v752 = vrcp.pop %v573
      %v753 = vmul.f32 %v735, %v752
      %v754 = vrcp.pop %v574
      %v755 = vmul.f32 %v736, %v754
      %v756 = vrcp.pop %v575
      %v757 = vmul.f32 %v737, %v756
      %v758 = vrcp.pop %v576
      %v759 = vmul.f32 %v738, %v758
      %v760 = vrcp.pop %v577
      %v761 = vmul.f32 %v739, %v760
      %v762 = vrcp.pop %v578
      %v763 = vmul.f32 %v740, %v762
      %v764 = vrcp.pop %v579
      %v765 = vmul.f32 %v741, %v764
      %v766 = vrcp.pop %v580
      %v767 = vmul.f32 %v742, %v766
      %v768 = vrcp.pop %v581
      %v769 = vmul.f32 %v743, %v768
      %v770 = vrcp.pop %v582
      %v771 = vmul.f32 %v744, %v770
      %v772 = vrcp.pop %v583
      %v773 = vmul.f32 %v745, %v772
      %v774 = vrcp.pop %v584
      %v775 = vmul.f32 %v746, %v774
      %v776 = vrcp.pop %v585
      %v777 = vmul.f32 %v747, %v776
      %v778 = vrcp.pop %v586
      %v779 = vmul.f32 %v748, %v778
      %v780 = vrcp.pop %v587
      %v781 = vmul.f32 %v749, %v780
      %v782 = vrsqrt.pop %v751
      %v783 = vmul.f32 %v751, %v782
      %vm784 = vcmp.eq.f32.partialorder %v751, inf
      %v785 = vsel %vm784, %v751, %v783
      %vm786 = vcmp.eq.f32.partialorder %v751, 0.0
      %v787 = vand.u32 %v751, 2147483648
      %v788 = vsel %vm786, %v787, %v785
      %v789 = vrsqrt.pop %v753
      %v790 = vmul.f32 %v753, %v789
      %vm791 = vcmp.eq.f32.partialorder %v753, inf
      %v792 = vsel %vm791, %v753, %v790
      %vm793 = vcmp.eq.f32.partialorder %v753, 0.0
      %v794 = vand.u32 %v753, 2147483648
      %v795 = vsel %vm793, %v794, %v792
      %v796 = vrsqrt.pop %v755
      %v797 = vmul.f32 %v755, %v796
      %vm798 = vcmp.eq.f32.partialorder %v755, inf
      %v799 = vsel %vm798, %v755, %v797
      %vm800 = vcmp.eq.f32.partialorder %v755, 0.0
      %v801 = vand.u32 %v755, 2147483648
      %v802 = vsel %vm800, %v801, %v799
      %v803 = vrsqrt.pop %v757
      %v804 = vmul.f32 %v757, %v803
      %vm805 = vcmp.eq.f32.partialorder %v757, inf
      %v806 = vsel %vm805, %v757, %v804
      %vm807 = vcmp.eq.f32.partialorder %v757, 0.0
      %v808 = vand.u32 %v757, 2147483648
      %v809 = vsel %vm807, %v808, %v806
      %v810 = vrsqrt.pop %v759
      %v811 = vmul.f32 %v759, %v810
      %vm812 = vcmp.eq.f32.partialorder %v759, inf
      %v813 = vsel %vm812, %v759, %v811
      %vm814 = vcmp.eq.f32.partialorder %v759, 0.0
      %v815 = vand.u32 %v759, 2147483648
      %v816 = vsel %vm814, %v815, %v813
      %v817 = vrsqrt.pop %v761
      %v818 = vmul.f32 %v761, %v817
      %vm819 = vcmp.eq.f32.partialorder %v761, inf
      %v820 = vsel %vm819, %v761, %v818
      %vm821 = vcmp.eq.f32.partialorder %v761, 0.0
      %v822 = vand.u32 %v761, 2147483648
      %v823 = vsel %vm821, %v822, %v820
      %v824 = vrsqrt.pop %v763
      %v825 = vmul.f32 %v763, %v824
      %vm826 = vcmp.eq.f32.partialorder %v763, inf
      %v827 = vsel %vm826, %v763, %v825
      %vm828 = vcmp.eq.f32.partialorder %v763, 0.0
      %v829 = vand.u32 %v763, 2147483648
      %v830 = vsel %vm828, %v829, %v827
      %v831 = vrsqrt.pop %v765
      %v832 = vmul.f32 %v765, %v831
      %vm833 = vcmp.eq.f32.partialorder %v765, inf
      %v834 = vsel %vm833, %v765, %v832
      %vm835 = vcmp.eq.f32.partialorder %v765, 0.0
      %v836 = vand.u32 %v765, 2147483648
      %v837 = vsel %vm835, %v836, %v834
      %v838 = vrsqrt.pop %v767
      %v839 = vmul.f32 %v767, %v838
      %vm840 = vcmp.eq.f32.partialorder %v767, inf
      %v841 = vsel %vm840, %v767, %v839
      %vm842 = vcmp.eq.f32.partialorder %v767, 0.0
      %v843 = vand.u32 %v767, 2147483648
      %v844 = vsel %vm842, %v843, %v841
      %v845 = vrsqrt.pop %v769
      %v846 = vmul.f32 %v769, %v845
      %vm847 = vcmp.eq.f32.partialorder %v769, inf
      %v848 = vsel %vm847, %v769, %v846
      %vm849 = vcmp.eq.f32.partialorder %v769, 0.0
      %v850 = vand.u32 %v769, 2147483648
      %v851 = vsel %vm849, %v850, %v848
      %v852 = vrsqrt.pop %v771
      %v853 = vmul.f32 %v771, %v852
      %vm854 = vcmp.eq.f32.partialorder %v771, inf
      %v855 = vsel %vm854, %v771, %v853
      %vm856 = vcmp.eq.f32.partialorder %v771, 0.0
      %v857 = vand.u32 %v771, 2147483648
      %v858 = vsel %vm856, %v857, %v855
      %v859 = vrsqrt.pop %v773
      %v860 = vmul.f32 %v773, %v859
      %vm861 = vcmp.eq.f32.partialorder %v773, inf
      %v862 = vsel %vm861, %v773, %v860
      %vm863 = vcmp.eq.f32.partialorder %v773, 0.0
      %v864 = vand.u32 %v773, 2147483648
      %v865 = vsel %vm863, %v864, %v862
      %v866 = vrsqrt.pop %v775
      %v867 = vmul.f32 %v775, %v866
      %vm868 = vcmp.eq.f32.partialorder %v775, inf
      %v869 = vsel %vm868, %v775, %v867
      %vm870 = vcmp.eq.f32.partialorder %v775, 0.0
      %v871 = vand.u32 %v775, 2147483648
      %v872 = vsel %vm870, %v871, %v869
      %v873 = vrsqrt.pop %v777
      %v874 = vmul.f32 %v777, %v873
      %vm875 = vcmp.eq.f32.partialorder %v777, inf
      %v876 = vsel %vm875, %v777, %v874
      %vm877 = vcmp.eq.f32.partialorder %v777, 0.0
      %v878 = vand.u32 %v777, 2147483648
      %v879 = vsel %vm877, %v878, %v876
      %v880 = vrsqrt.pop %v779
      %v881 = vmul.f32 %v779, %v880
      %vm882 = vcmp.eq.f32.partialorder %v779, inf
      %v883 = vsel %vm882, %v779, %v881
      %vm884 = vcmp.eq.f32.partialorder %v779, 0.0
      %v885 = vand.u32 %v779, 2147483648
      %v886 = vsel %vm884, %v885, %v883
      %v887 = vrsqrt.pop %v781
      %v888 = vmul.f32 %v781, %v887
      %vm889 = vcmp.eq.f32.partialorder %v781, inf
      %v890 = vsel %vm889, %v781, %v888
      %vm891 = vcmp.eq.f32.partialorder %v781, 0.0
      %v892 = vand.u32 %v781, 2147483648
      %v893 = vsel %vm891, %v892, %v890
      %895 = vset.pattern.permute.xlu0 0
      %896 = vperm.xlu0 %895, %v788
      %v897 = vpop.permute.xlu0 %896
      %900 = vset.pattern.permute.xlu0 0
      %901 = vperm.xlu0 %900, %v795
      %v902 = vpop.permute.xlu0 %901
      %905 = vset.pattern.permute.xlu0 0
      %906 = vperm.xlu0 %905, %v802
      %v907 = vpop.permute.xlu0 %906
      %910 = vset.pattern.permute.xlu0 0
      %911 = vperm.xlu0 %910, %v809
      %v912 = vpop.permute.xlu0 %911
      %915 = vset.pattern.permute.xlu0 0
      %916 = vperm.xlu0 %915, %v816
      %v917 = vpop.permute.xlu0 %916
      %920 = vset.pattern.permute.xlu0 0
      %921 = vperm.xlu0 %920, %v823
      %v922 = vpop.permute.xlu0 %921
      %925 = vset.pattern.permute.xlu0 0
      %926 = vperm.xlu0 %925, %v830
      %v927 = vpop.permute.xlu0 %926
      %930 = vset.pattern.permute.xlu0 0
      %931 = vperm.xlu0 %930, %v837
      %v932 = vpop.permute.xlu0 %931
      %935 = vset.pattern.permute.xlu0 0
      %936 = vperm.xlu0 %935, %v844
      %v937 = vpop.permute.xlu0 %936
      %940 = vset.pattern.permute.xlu0 0
      %941 = vperm.xlu0 %940, %v851
      %v942 = vpop.permute.xlu0 %941
      %945 = vset.pattern.permute.xlu0 0
      %946 = vperm.xlu0 %945, %v858
      %v947 = vpop.permute.xlu0 %946
      %950 = vset.pattern.permute.xlu0 0
      %951 = vperm.xlu0 %950, %v865
      %v952 = vpop.permute.xlu0 %951
      %955 = vset.pattern.permute.xlu0 0
      %956 = vperm.xlu0 %955, %v872
      %v957 = vpop.permute.xlu0 %956
      %960 = vset.pattern.permute.xlu0 0
      %961 = vperm.xlu0 %960, %v879
      %v962 = vpop.permute.xlu0 %961
      %965 = vset.pattern.permute.xlu0 0
      %966 = vperm.xlu0 %965, %v886
      %v967 = vpop.permute.xlu0 %966
      %970 = vset.pattern.permute.xlu0 0
      %971 = vperm.xlu0 %970, %v893
      %v972 = vpop.permute.xlu0 %971
      %v974 = vmul.f32 %v443, %v897
      %v975 = vmul.f32 %v446, %v902
      %v976 = vmul.f32 %v451, %v907
      %v977 = vmul.f32 %v454, %v912
      %v978 = vmul.f32 %v459, %v917
      %v979 = vmul.f32 %v462, %v922
      %v980 = vmul.f32 %v467, %v927
      %v981 = vmul.f32 %v470, %v932
      %v982 = vmul.f32 %v475, %v937
      %v983 = vmul.f32 %v478, %v942
      %v984 = vmul.f32 %v483, %v947
      %v985 = vmul.f32 %v486, %v952
      %v986 = vmul.f32 %v491, %v957
      %v987 = vmul.f32 %v494, %v962
      %v988 = vmul.f32 %v499, %v967
      %v989 = vmul.f32 %v502, %v972
      %991 = vset.pattern.permute.xlu0 0
      %992 = vperm.xlu0 %991, %v702
      %v993 = vpop.permute.xlu0 %992
      %996 = vset.pattern.permute.xlu0 0
      %997 = vperm.xlu0 %996, %v703
      %v998 = vpop.permute.xlu0 %997
      %1001 = vset.pattern.permute.xlu0 0
      %1002 = vperm.xlu0 %1001, %v704
      %v1003 = vpop.permute.xlu0 %1002
      %1006 = vset.pattern.permute.xlu0 0
      %1007 = vperm.xlu0 %1006, %v705
      %v1008 = vpop.permute.xlu0 %1007
      %1011 = vset.pattern.permute.xlu0 0
      %1012 = vperm.xlu0 %1011, %v706
      %v1013 = vpop.permute.xlu0 %1012
      %1016 = vset.pattern.permute.xlu0 0
      %1017 = vperm.xlu0 %1016, %v707
      %v1018 = vpop.permute.xlu0 %1017
      %1021 = vset.pattern.permute.xlu0 0
      %1022 = vperm.xlu0 %1021, %v708
      %v1023 = vpop.permute.xlu0 %1022
      %1026 = vset.pattern.permute.xlu0 0
      %1027 = vperm.xlu0 %1026, %v709
      %v1028 = vpop.permute.xlu0 %1027
      %1031 = vset.pattern.permute.xlu0 0
      %1032 = vperm.xlu0 %1031, %v710
      %v1033 = vpop.permute.xlu0 %1032
      %1036 = vset.pattern.permute.xlu0 0
      %1037 = vperm.xlu0 %1036, %v711
      %v1038 = vpop.permute.xlu0 %1037
      %1041 = vset.pattern.permute.xlu0 0
      %1042 = vperm.xlu0 %1041, %v712
      %v1043 = vpop.permute.xlu0 %1042
      %1046 = vset.pattern.permute.xlu0 0
      %1047 = vperm.xlu0 %1046, %v713
      %v1048 = vpop.permute.xlu0 %1047
      %1051 = vset.pattern.permute.xlu0 0
      %1052 = vperm.xlu0 %1051, %v714
      %v1053 = vpop.permute.xlu0 %1052
      %1056 = vset.pattern.permute.xlu0 0
      %1057 = vperm.xlu0 %1056, %v715
      %v1058 = vpop.permute.xlu0 %1057
      %1061 = vset.pattern.permute.xlu0 0
      %1062 = vperm.xlu0 %1061, %v716
      %v1063 = vpop.permute.xlu0 %1062
      %1066 = vset.pattern.permute.xlu0 0
      %1067 = vperm.xlu0 %1066, %v717
      %v1068 = vpop.permute.xlu0 %1067
      %v1070 = vsel %vm507, %v993, %v974
      %v1071 = vsel %vm507, %v998, %v975
      %v1072 = vsel %vm507, %v1003, %v976
      %v1073 = vsel %vm507, %v1008, %v977
      %v1074 = vsel %vm507, %v1013, %v978
      %v1075 = vsel %vm507, %v1018, %v979
      %v1076 = vsel %vm507, %v1023, %v980
      %v1077 = vsel %vm507, %v1028, %v981
      %v1078 = vsel %vm507, %v1033, %v982
      %v1079 = vsel %vm507, %v1038, %v983
      %v1080 = vsel %vm507, %v1043, %v984
      %v1081 = vsel %vm507, %v1048, %v985
      %v1082 = vsel %vm507, %v1053, %v986
      %v1083 = vsel %vm507, %v1058, %v987
      %v1084 = vsel %vm507, %v1063, %v988
      %v1085 = vsel %vm507, %v1068, %v989
      %v1086 = vld [vmem:[%s2] sm:$0xf]
      %v1087 = vld [vmem:[%s2 + $0x4] sm:$0xf]
      %v1088 = vld [vmem:[%s2 + $0x8] sm:$0xf]
      %v1089 = vld [vmem:[%s2 + $0xc] sm:$0xf]
      %v1090 = vld [vmem:[%s2 + $0x10] sm:$0xf]
      %v1091 = vld [vmem:[%s2 + $0x14] sm:$0xf]
      %v1092 = vld [vmem:[%s2 + $0x18] sm:$0xf]
      %v1093 = vld [vmem:[%s2 + $0x1c] sm:$0xf]
      %v1094 = vld [vmem:[%s2 + $0x20] sm:$0xf]
      %v1095 = vld [vmem:[%s2 + $0x24] sm:$0xf]
      %v1096 = vld [vmem:[%s2 + $0x28] sm:$0xf]
      %v1097 = vld [vmem:[%s2 + $0x2c] sm:$0xf]
      %v1098 = vld [vmem:[%s2 + $0x30] sm:$0xf]
      %v1099 = vld [vmem:[%s2 + $0x34] sm:$0xf]
      %v1100 = vld [vmem:[%s2 + $0x38] sm:$0xf]
      %v1101 = vld [vmem:[%s2 + $0x3c] sm:$0xf]
      %v1102 = vpack.c.bf16 %v1071, %v1070
      %v1103 = vpack.c.bf16 %v1073, %v1072
      %v1104 = vpack.c.bf16 %v1075, %v1074
      %v1105 = vpack.c.bf16 %v1077, %v1076
      %v1106 = vpack.c.bf16 %v1079, %v1078
      %v1107 = vpack.c.bf16 %v1081, %v1080
      %v1108 = vpack.c.bf16 %v1083, %v1082
      %v1109 = vpack.c.bf16 %v1085, %v1084
      %v1126 = vunpack.c.l.b16 %v1086
      %v1127 = vunpack.c.l.b16 %v1087
      %v1128 = vunpack.c.l.b16 %v1088
      %v1129 = vunpack.c.l.b16 %v1089
      %v1130 = vunpack.c.l.b16 %v1090
      %v1131 = vunpack.c.l.b16 %v1091
      %v1132 = vunpack.c.l.b16 %v1092
      %v1133 = vunpack.c.l.b16 %v1093
      %v1134 = vunpack.c.l.b16 %v1094
      %v1135 = vunpack.c.l.b16 %v1095
      %v1136 = vunpack.c.l.b16 %v1096
      %v1137 = vunpack.c.l.b16 %v1097
      %v1138 = vunpack.c.l.b16 %v1098
      %v1139 = vunpack.c.l.b16 %v1099
      %v1140 = vunpack.c.l.b16 %v1100
      %v1141 = vunpack.c.l.b16 %v1101
      %v1142 = vpack.c.b16 %v1127, %v1126
      %v1143 = vpack.c.b16 %v1129, %v1128
      %v1144 = vpack.c.b16 %v1131, %v1130
      %v1145 = vpack.c.b16 %v1133, %v1132
      %v1146 = vpack.c.b16 %v1135, %v1134
      %v1147 = vpack.c.b16 %v1137, %v1136
      %v1148 = vpack.c.b16 %v1139, %v1138
      %v1149 = vpack.c.b16 %v1141, %v1140
      %1158 = vmatprep.subr.bf16.mxu0 0
      %1159 = vmatpush1.bf16.msra.mxu0 %v1102
      %1160 = vmatprep.subr.bf16.mxu0 0
      %1161 = vmatpush1.bf16.msra.mxu0 %v1103
      %1162 = vmatprep.subr.bf16.mxu0 0
      %1163 = vmatpush1.bf16.msra.mxu0 %v1104
      %1164 = vmatprep.subr.bf16.mxu0 0
      %1165 = vmatpush1.bf16.msra.mxu0 %v1105
      %1166 = vmatprep.subr.bf16.mxu0 0
      %1167 = vmatpush1.bf16.msra.mxu0 %v1106
      %1168 = vmatprep.subr.bf16.mxu0 0
      %1169 = vmatpush1.bf16.msra.mxu0 %v1107
      %1170 = vmatprep.subr.bf16.mxu0 0
      %1171 = vmatpush1.bf16.msra.mxu0 %v1108
      %1172 = vmatprep.subr.bf16.mxu0 0
      %1173 = vmatpush1.bf16.msra.mxu0 %v1109
      %1174 = vmatprep.subr.bf16.mxu0 0
      %1175 = vmatpush1.bf16.msra.mxu0 0
      %1176 = vmatprep.subr.bf16.mxu0 0
      %1177 = vmatpush1.bf16.msra.mxu0 0
      %1178 = vmatprep.subr.bf16.mxu0 0
      %1179 = vmatpush1.bf16.msra.mxu0 0
      %1180 = vmatprep.subr.bf16.mxu0 0
      %1181 = vmatpush1.bf16.msra.mxu0 0
      %1182 = vmatprep.subr.bf16.mxu0 0
      %1183 = vmatpush1.bf16.msra.mxu0 0
      %1184 = vmatprep.subr.bf16.mxu0 0
      %1185 = vmatpush1.bf16.msra.mxu0 0
      %1186 = vmatprep.subr.bf16.mxu0 0
      %1187 = vmatpush1.bf16.msra.mxu0 0
      %1188 = vmatprep.subr.bf16.mxu0 0
      %1189 = vmatpush1.bf16.msra.mxu0 0
      %1190 = vmatprep.mubr.bf16.mxu0 0
      %1191 = vmatmul.mubr.bf16.gmra.mrb[0].mxu0 %v1142
      %v1192 = vpop.f32.mrb[0].mxu0
      %v1193 = vadd.f32 0.0, %v1192
      %v1194 = vpop.f32.mrb[0].mxu0
      %v1195 = vpop.f32.mrb[0].mxu0
      %v1196 = vadd.f32 0.0, %v1195
      %v1197 = vpop.f32.mrb[0].mxu0
      %1198 = vmatprep.mubr.bf16.mxu0 0
      %1199 = vmatmul.mubr.bf16.gmra.mrb[0].mxu0 %v1143
      %v1200 = vpop.f32.mrb[0].mxu0
      %v1201 = vadd.f32 0.0, %v1200
      %v1202 = vpop.f32.mrb[0].mxu0
      %v1203 = vpop.f32.mrb[0].mxu0
      %v1204 = vadd.f32 0.0, %v1203
      %v1205 = vpop.f32.mrb[0].mxu0
      %1206 = vmatprep.mubr.bf16.mxu0 0
      %1207 = vmatmul.mubr.bf16.gmra.mrb[0].mxu0 %v1144
      %v1208 = vpop.f32.mrb[0].mxu0
      %v1209 = vadd.f32 0.0, %v1208
      %v1210 = vpop.f32.mrb[0].mxu0
      %v1211 = vpop.f32.mrb[0].mxu0
      %v1212 = vadd.f32 0.0, %v1211
      %v1213 = vpop.f32.mrb[0].mxu0
      %1214 = vmatprep.mubr.bf16.mxu0 0
      %1215 = vmatmul.mubr.bf16.gmra.mrb[0].mxu0 %v1145
      %v1216 = vpop.f32.mrb[0].mxu0
      %v1217 = vadd.f32 0.0, %v1216
      %v1218 = vpop.f32.mrb[0].mxu0
      %v1219 = vpop.f32.mrb[0].mxu0
      %v1220 = vadd.f32 0.0, %v1219
      %v1221 = vpop.f32.mrb[0].mxu0
      %1222 = vmatprep.mubr.bf16.mxu0 0
      %1223 = vmatmul.mubr.bf16.gmra.mrb[0].mxu0 %v1146
      %v1224 = vpop.f32.mrb[0].mxu0
      %v1225 = vadd.f32 0.0, %v1224
      %v1226 = vpop.f32.mrb[0].mxu0
      %v1227 = vpop.f32.mrb[0].mxu0
      %v1228 = vadd.f32 0.0, %v1227
      %v1229 = vpop.f32.mrb[0].mxu0
      %1230 = vmatprep.mubr.bf16.mxu0 0
      %1231 = vmatmul.mubr.bf16.gmra.mrb[0].mxu0 %v1147
      %v1232 = vpop.f32.mrb[0].mxu0
      %v1233 = vadd.f32 0.0, %v1232
      %v1234 = vpop.f32.mrb[0].mxu0
      %v1235 = vpop.f32.mrb[0].mxu0
      %v1236 = vadd.f32 0.0, %v1235
      %v1237 = vpop.f32.mrb[0].mxu0
      %1238 = vmatprep.mubr.bf16.mxu0 0
      %1239 = vmatmul.mubr.bf16.gmra.mrb[0].mxu0 %v1148
      %v1240 = vpop.f32.mrb[0].mxu0
      %v1241 = vadd.f32 0.0, %v1240
      %v1242 = vpop.f32.mrb[0].mxu0
      %v1243 = vpop.f32.mrb[0].mxu0
      %v1244 = vadd.f32 0.0, %v1243
      %v1245 = vpop.f32.mrb[0].mxu0
      %1246 = vmatprep.mubr.bf16.mxu0 0
      %1247 = vmatmul.mubr.bf16.gmra.mrb[0].mxu0 %v1149
      %v1248 = vpop.f32.mrb[0].mxu0
      %v1249 = vadd.f32 0.0, %v1248
      %v1250 = vpop.f32.mrb[0].mxu0
      %v1251 = vpop.f32.mrb[0].mxu0
      %v1252 = vadd.f32 0.0, %v1251
      %v1253 = vpop.f32.mrb[0].mxu0
      %1254 = vdwg.mxu0
      %v1255 = vmul.f32 %v1193, %v1193
      %v1256 = vmul.f32 %v1196, %v1196
      %v1257 = vmul.f32 %v1201, %v1201
      %v1258 = vmul.f32 %v1204, %v1204
      %v1259 = vmul.f32 %v1209, %v1209
      %v1260 = vmul.f32 %v1212, %v1212
      %v1261 = vmul.f32 %v1217, %v1217
      %v1262 = vmul.f32 %v1220, %v1220
      %v1263 = vmul.f32 %v1225, %v1225
      %v1264 = vmul.f32 %v1228, %v1228
      %v1265 = vmul.f32 %v1233, %v1233
      %v1266 = vmul.f32 %v1236, %v1236
      %v1267 = vmul.f32 %v1241, %v1241
      %v1268 = vmul.f32 %v1244, %v1244
      %v1269 = vmul.f32 %v1249, %v1249
      %v1270 = vmul.f32 %v1252, %v1252
      %v1271 = vsel %vm507, 0.0, %v1255
      %v1272 = vsel %vm507, 0.0, %v1256
      %v1273 = vsel %vm507, 0.0, %v1257
      %v1274 = vsel %vm507, 0.0, %v1258
      %v1275 = vsel %vm507, 0.0, %v1259
      %v1276 = vsel %vm507, 0.0, %v1260
      %v1277 = vsel %vm507, 0.0, %v1261
      %v1278 = vsel %vm507, 0.0, %v1262
      %v1279 = vsel %vm507, 0.0, %v1263
      %v1280 = vsel %vm507, 0.0, %v1264
      %v1281 = vsel %vm507, 0.0, %v1265
      %v1282 = vsel %vm507, 0.0, %v1266
      %v1283 = vsel %vm507, 0.0, %v1267
      %v1284 = vsel %vm507, 0.0, %v1268
      %v1285 = vsel %vm507, 0.0, %v1269
      %v1286 = vsel %vm507, 0.0, %v1270
      %1287 = vadd.xlane.f32.xlu0 %v1271
      %v1288 = vpop.xlane.xlu0 %1287
      %1289 = vadd.xlane.f32.xlu0 %v1272
      %v1290 = vpop.xlane.xlu0 %1289
      %1291 = vadd.xlane.f32.xlu0 %v1273
      %v1292 = vpop.xlane.xlu0 %1291
      %1293 = vadd.xlane.f32.xlu0 %v1274
      %v1294 = vpop.xlane.xlu0 %1293
      %1295 = vadd.xlane.f32.xlu0 %v1275
      %v1296 = vpop.xlane.xlu0 %1295
      %1297 = vadd.xlane.f32.xlu0 %v1276
      %v1298 = vpop.xlane.xlu0 %1297
      %1299 = vadd.xlane.f32.xlu0 %v1277
      %v1300 = vpop.xlane.xlu0 %1299
      %1301 = vadd.xlane.f32.xlu0 %v1278
      %v1302 = vpop.xlane.xlu0 %1301
      %1303 = vadd.xlane.f32.xlu0 %v1279
      %v1304 = vpop.xlane.xlu0 %1303
      %1305 = vadd.xlane.f32.xlu0 %v1280
      %v1306 = vpop.xlane.xlu0 %1305
      %1307 = vadd.xlane.f32.xlu0 %v1281
      %v1308 = vpop.xlane.xlu0 %1307
      %1309 = vadd.xlane.f32.xlu0 %v1282
      %v1310 = vpop.xlane.xlu0 %1309
      %1311 = vadd.xlane.f32.xlu0 %v1283
      %v1312 = vpop.xlane.xlu0 %1311
      %1313 = vadd.xlane.f32.xlu0 %v1284
      %v1314 = vpop.xlane.xlu0 %1313
      %1315 = vadd.xlane.f32.xlu0 %v1285
      %v1316 = vpop.xlane.xlu0 %1315
      %1317 = vadd.xlane.f32.xlu0 %v1286
      %v1318 = vpop.xlane.xlu0 %1317
      %v1319 = vsub.f32 %v1255, %v1288
      %v1320 = vsub.f32 %v1256, %v1290
      %v1321 = vsub.f32 %v1257, %v1292
      %v1322 = vsub.f32 %v1258, %v1294
      %v1323 = vsub.f32 %v1259, %v1296
      %v1324 = vsub.f32 %v1260, %v1298
      %v1325 = vsub.f32 %v1261, %v1300
      %v1326 = vsub.f32 %v1262, %v1302
      %v1327 = vsub.f32 %v1263, %v1304
      %v1328 = vsub.f32 %v1264, %v1306
      %v1329 = vsub.f32 %v1265, %v1308
      %v1330 = vsub.f32 %v1266, %v1310
      %v1331 = vsub.f32 %v1267, %v1312
      %v1332 = vsub.f32 %v1268, %v1314
      %v1333 = vsub.f32 %v1269, %v1316
      %v1334 = vsub.f32 %v1270, %v1318
      %v1335 = vand.u32 2147483647, %v1319
      %v1336 = vand.u32 2147483647, %v1320
      %v1337 = vand.u32 2147483647, %v1321
      %v1338 = vand.u32 2147483647, %v1322
      %v1339 = vand.u32 2147483647, %v1323
      %v1340 = vand.u32 2147483647, %v1324
      %v1341 = vand.u32 2147483647, %v1325
      %v1342 = vand.u32 2147483647, %v1326
      %v1343 = vand.u32 2147483647, %v1327
      %v1344 = vand.u32 2147483647, %v1328
      %v1345 = vand.u32 2147483647, %v1329
      %v1346 = vand.u32 2147483647, %v1330
      %v1347 = vand.u32 2147483647, %v1331
      %v1348 = vand.u32 2147483647, %v1332
      %v1349 = vand.u32 2147483647, %v1333
      %v1350 = vand.u32 2147483647, %v1334
      %v1351 = vmax.f32 %v1335, 1e-08
      %v1352 = vmax.f32 %v1336, 1e-08
      %v1353 = vmax.f32 %v1337, 1e-08
      %v1354 = vmax.f32 %v1338, 1e-08
      %v1355 = vmax.f32 %v1339, 1e-08
      %v1356 = vmax.f32 %v1340, 1e-08
      %v1357 = vmax.f32 %v1341, 1e-08
      %v1358 = vmax.f32 %v1342, 1e-08
      %v1359 = vmax.f32 %v1343, 1e-08
      %v1360 = vmax.f32 %v1344, 1e-08
      %v1361 = vmax.f32 %v1345, 1e-08
      %v1362 = vmax.f32 %v1346, 1e-08
      %v1363 = vmax.f32 %v1347, 1e-08
      %v1364 = vmax.f32 %v1348, 1e-08
      %v1365 = vmax.f32 %v1349, 1e-08
      %v1366 = vmax.f32 %v1350, 1e-08
      %v1367 = vrsqrt.pop %v1351
      %v1368 = vrsqrt.pop %v1352
      %v1369 = vrsqrt.pop %v1353
      %v1370 = vrsqrt.pop %v1354
      %v1371 = vrsqrt.pop %v1355
      %v1372 = vrsqrt.pop %v1356
      %v1373 = vrsqrt.pop %v1357
      %v1374 = vrsqrt.pop %v1358
      %v1375 = vrsqrt.pop %v1359
      %v1376 = vrsqrt.pop %v1360
      %v1377 = vrsqrt.pop %v1361
      %v1378 = vrsqrt.pop %v1362
      %v1379 = vrsqrt.pop %v1363
      %v1380 = vrsqrt.pop %v1364
      %v1381 = vrsqrt.pop %v1365
      %v1382 = vrsqrt.pop %v1366
      %1384 = vset.pattern.permute.xlu0 0
      %1385 = vperm.xlu0 %1384, %v1367
      %v1386 = vpop.permute.xlu0 %1385
      %1389 = vset.pattern.permute.xlu0 0
      %1390 = vperm.xlu0 %1389, %v1368
      %v1391 = vpop.permute.xlu0 %1390
      %1394 = vset.pattern.permute.xlu0 0
      %1395 = vperm.xlu0 %1394, %v1369
      %v1396 = vpop.permute.xlu0 %1395
      %1399 = vset.pattern.permute.xlu0 0
      %1400 = vperm.xlu0 %1399, %v1370
      %v1401 = vpop.permute.xlu0 %1400
      %1404 = vset.pattern.permute.xlu0 0
      %1405 = vperm.xlu0 %1404, %v1371
      %v1406 = vpop.permute.xlu0 %1405
      %1409 = vset.pattern.permute.xlu0 0
      %1410 = vperm.xlu0 %1409, %v1372
      %v1411 = vpop.permute.xlu0 %1410
      %1414 = vset.pattern.permute.xlu0 0
      %1415 = vperm.xlu0 %1414, %v1373
      %v1416 = vpop.permute.xlu0 %1415
      %1419 = vset.pattern.permute.xlu0 0
      %1420 = vperm.xlu0 %1419, %v1374
      %v1421 = vpop.permute.xlu0 %1420
      %1424 = vset.pattern.permute.xlu0 0
      %1425 = vperm.xlu0 %1424, %v1375
      %v1426 = vpop.permute.xlu0 %1425
      %1429 = vset.pattern.permute.xlu0 0
      %1430 = vperm.xlu0 %1429, %v1376
      %v1431 = vpop.permute.xlu0 %1430
      %1434 = vset.pattern.permute.xlu0 0
      %1435 = vperm.xlu0 %1434, %v1377
      %v1436 = vpop.permute.xlu0 %1435
      %1439 = vset.pattern.permute.xlu0 0
      %1440 = vperm.xlu0 %1439, %v1378
      %v1441 = vpop.permute.xlu0 %1440
      %1444 = vset.pattern.permute.xlu0 0
      %1445 = vperm.xlu0 %1444, %v1379
      %v1446 = vpop.permute.xlu0 %1445
      %1449 = vset.pattern.permute.xlu0 0
      %1450 = vperm.xlu0 %1449, %v1380
      %v1451 = vpop.permute.xlu0 %1450
      %1454 = vset.pattern.permute.xlu0 0
      %1455 = vperm.xlu0 %1454, %v1381
      %v1456 = vpop.permute.xlu0 %1455
      %1459 = vset.pattern.permute.xlu0 0
      %1460 = vperm.xlu0 %1459, %v1382
      %v1461 = vpop.permute.xlu0 %1460
      %v1463 = vmul.f32 %v1193, %v1386
      %v1464 = vmul.f32 %v1196, %v1391
      %v1465 = vmul.f32 %v1201, %v1396
      %v1466 = vmul.f32 %v1204, %v1401
      %v1467 = vmul.f32 %v1209, %v1406
      %v1468 = vmul.f32 %v1212, %v1411
      %v1469 = vmul.f32 %v1217, %v1416
      %v1470 = vmul.f32 %v1220, %v1421
      %v1471 = vmul.f32 %v1225, %v1426
      %v1472 = vmul.f32 %v1228, %v1431
      %v1473 = vmul.f32 %v1233, %v1436
      %v1474 = vmul.f32 %v1236, %v1441
      %v1475 = vmul.f32 %v1241, %v1446
      %v1476 = vmul.f32 %v1244, %v1451
      %v1477 = vmul.f32 %v1249, %v1456
      %v1478 = vmul.f32 %v1252, %v1461
      %p1479 = scmp.ne.s32.totalorder %s25, 2
      // Predicated region
      $region79: #{hyperbolic_jtnn_encoder_forward.1} parent=35 // pred_check
        %p1480 = pneg %p1479
      $region80: #{hyperbolic_jtnn_encoder_forward.1} parent=35 // pred_check_branch
        %1482 = sbr.rel (%p1480) target = $region82
      $region81: #{hyperbolic_jtnn_encoder_forward.1} parent=35 // pred_region
        %v1483 = vmax.f32 %v1463, 0.0
        %v1484 = vmax.f32 %v1464, 0.0
        %v1485 = vmax.f32 %v1465, 0.0
        %v1486 = vmax.f32 %v1466, 0.0
        %v1487 = vmax.f32 %v1467, 0.0
        %v1488 = vmax.f32 %v1468, 0.0
        %v1489 = vmax.f32 %v1469, 0.0
        %v1490 = vmax.f32 %v1470, 0.0
        %v1491 = vmax.f32 %v1471, 0.0
        %v1492 = vmax.f32 %v1472, 0.0
        %v1493 = vmax.f32 %v1473, 0.0
        %v1494 = vmax.f32 %v1474, 0.0
        %v1495 = vmax.f32 %v1475, 0.0
        %v1496 = vmax.f32 %v1476, 0.0
        %v1497 = vmax.f32 %v1477, 0.0
        %v1498 = vmax.f32 %v1478, 0.0
        %1499 = vst [vmem:[%s6] sm:$0xff] %v1483
        %1500 = vst [vmem:[%s6 + $0x8] sm:$0xff] %v1484
        %1501 = vst [vmem:[%s6 + $0x10] sm:$0xff] %v1485
        %1502 = vst [vmem:[%s6 + $0x18] sm:$0xff] %v1486
        %1503 = vst [vmem:[%s6 + $0x20] sm:$0xff] %v1487
        %1504 = vst [vmem:[%s6 + $0x28] sm:$0xff] %v1488
        %1505 = vst [vmem:[%s6 + $0x30] sm:$0xff] %v1489
        %1506 = vst [vmem:[%s6 + $0x38] sm:$0xff] %v1490
        %1507 = vst [vmem:[%s6 + $0x40] sm:$0xff] %v1491
        %1508 = vst [vmem:[%s6 + $0x48] sm:$0xff] %v1492
        %1509 = vst [vmem:[%s6 + $0x50] sm:$0xff] %v1493
        %1510 = vst [vmem:[%s6 + $0x58] sm:$0xff] %v1494
        %1511 = vst [vmem:[%s6 + $0x60] sm:$0xff] %v1495
        %1512 = vst [vmem:[%s6 + $0x68] sm:$0xff] %v1496
        %1513 = vst [vmem:[%s6 + $0x70] sm:$0xff] %v1497
        %1514 = vst [vmem:[%s6 + $0x78] sm:$0xff] %v1498
      $region82: #{hyperbolic_jtnn_encoder_forward.1} parent=35 // pred_fallthru
        _
      %p1515 = scmp.eq.s32.totalorder %s25, 2
      // Predicated region
      $region83: #{hyperbolic_jtnn_encoder_forward.1} parent=35 // pred_check
        %p1516 = pneg %p1515
      $region84: #{hyperbolic_jtnn_encoder_forward.1} parent=35 // pred_check_branch
        %1518 = sbr.rel (%p1516) target = $region86
      $region85: #{hyperbolic_jtnn_encoder_forward.1} parent=35 // pred_region
        %1519 = vst [vmem:[%s6] sm:$0xff] %v1463
        %1520 = vst [vmem:[%s6 + $0x8] sm:$0xff] %v1464
        %1521 = vst [vmem:[%s6 + $0x10] sm:$0xff] %v1465
        %1522 = vst [vmem:[%s6 + $0x18] sm:$0xff] %v1466
        %1523 = vst [vmem:[%s6 + $0x20] sm:$0xff] %v1467
        %1524 = vst [vmem:[%s6 + $0x28] sm:$0xff] %v1468
        %1525 = vst [vmem:[%s6 + $0x30] sm:$0xff] %v1469
        %1526 = vst [vmem:[%s6 + $0x38] sm:$0xff] %v1470
        %1527 = vst [vmem:[%s6 + $0x40] sm:$0xff] %v1471
        %1528 = vst [vmem:[%s6 + $0x48] sm:$0xff] %v1472
        %1529 = vst [vmem:[%s6 + $0x50] sm:$0xff] %v1473
        %1530 = vst [vmem:[%s6 + $0x58] sm:$0xff] %v1474
        %1531 = vst [vmem:[%s6 + $0x60] sm:$0xff] %v1475
        %1532 = vst [vmem:[%s6 + $0x68] sm:$0xff] %v1476
        %1533 = vst [vmem:[%s6 + $0x70] sm:$0xff] %v1477
        %1534 = vst [vmem:[%s6 + $0x78] sm:$0xff] %v1478
        %s1535 = smul.u32 4, 2
        %s1536 = smul.u32 %s1535, 1
        %s1537 = sshll.u32 %s1536, 4
        %1538 = dma.done [#allocation3], %s1537
        %v1539 = vld [vmem:[#allocation2] sm:$0xff]
        %v1540 = vpack.c.bf16 %v1464, %v1463
        %v1541 = vpack.c.bf16 %v1466, %v1465
        %v1542 = vpack.c.bf16 %v1468, %v1467
        %v1543 = vpack.c.bf16 %v1470, %v1469
        %v1544 = vpack.c.bf16 %v1472, %v1471
        %v1545 = vpack.c.bf16 %v1474, %v1473
        %v1546 = vpack.c.bf16 %v1476, %v1475
        %v1547 = vpack.c.bf16 %v1478, %v1477
        %1548 = vmatprep.subr.bf16.mxu0 0
        %1549 = vmatpush1.bf16.msra.mxu0 %v1540
        %1550 = vmatprep.subr.bf16.mxu0 0
        %1551 = vmatpush1.bf16.msra.mxu0 %v1541
        %1552 = vmatprep.subr.bf16.mxu0 0
        %1553 = vmatpush1.bf16.msra.mxu0 %v1542
        %1554 = vmatprep.subr.bf16.mxu0 0
        %1555 = vmatpush1.bf16.msra.mxu0 %v1543
        %1556 = vmatprep.subr.bf16.mxu0 0
        %1557 = vmatpush1.bf16.msra.mxu0 %v1544
        %1558 = vmatprep.subr.bf16.mxu0 0
        %1559 = vmatpush1.bf16.msra.mxu0 %v1545
        %1560 = vmatprep.subr.bf16.mxu0 0
        %1561 = vmatpush1.bf16.msra.mxu0 %v1546
        %1562 = vmatprep.subr.bf16.mxu0 0
        %1563 = vmatpush1.bf16.msra.mxu0 %v1547
        %1564 = vmatprep.subr.bf16.mxu0 0
        %1565 = vmatpush1.bf16.msra.mxu0 0
        %1566 = vmatprep.subr.bf16.mxu0 0
        %1567 = vmatpush1.bf16.msra.mxu0 0
        %1568 = vmatprep.subr.bf16.mxu0 0
        %1569 = vmatpush1.bf16.msra.mxu0 0
        %1570 = vmatprep.subr.bf16.mxu0 0
        %1571 = vmatpush1.bf16.msra.mxu0 0
        %1572 = vmatprep.subr.bf16.mxu0 0
        %1573 = vmatpush1.bf16.msra.mxu0 0
        %1574 = vmatprep.subr.bf16.mxu0 0
        %1575 = vmatpush1.bf16.msra.mxu0 0
        %1576 = vmatprep.subr.bf16.mxu0 0
        %1577 = vmatpush1.bf16.msra.mxu0 0
        %1578 = vmatprep.subr.bf16.mxu0 0
        %1579 = vmatpush1.bf16.msra.mxu0 0
        %1580 = vmatprep.mubr.bf16.mxu0 0
        %1581 = vmatmul.mubr.bf16.gmra.mrb[0].mxu0 %v1539
        %v1582 = vpop.f32.mrb[0].mxu0
        %v1583 = vadd.f32 0.0, %v1582
        %v1584 = vpop.f32.mrb[0].mxu0
        %v1585 = vpop.f32.mrb[0].mxu0
        %v1586 = vadd.f32 0.0, %v1585
        %v1587 = vpop.f32.mrb[0].mxu0
        %1588 = vdwg.mxu0
        %v1589 = vmul.f32 %v1583, %v1583
        %v1590 = vmul.f32 %v1586, %v1586
        %v1591 = vsel %vm507, 0.0, %v1589
        %v1592 = vsel %vm507, 0.0, %v1590
        %1593 = vadd.xlane.f32.xlu0 %v1591
        %v1594 = vpop.xlane.xlu0 %1593
        %1595 = vadd.xlane.f32.xlu0 %v1592
        %v1596 = vpop.xlane.xlu0 %1595
        %v1597 = vsub.f32 %v1589, %v1594
        %v1598 = vsub.f32 %v1590, %v1596
        %v1599 = vand.u32 2147483647, %v1597
        %v1600 = vand.u32 2147483647, %v1598
        %v1601 = vmax.f32 %v1599, 1e-08
        %v1602 = vmax.f32 %v1600, 1e-08
        %v1603 = vrsqrt.pop %v1601
        %v1604 = vrsqrt.pop %v1602
        %1606 = vset.pattern.permute.xlu0 0
        %1607 = vperm.xlu0 %1606, %v1603
        %v1608 = vpop.permute.xlu0 %1607
        %1611 = vset.pattern.permute.xlu0 0
        %1612 = vperm.xlu0 %1611, %v1604
        %v1613 = vpop.permute.xlu0 %1612
        %v1615 = vmul.f32 %v1583, %v1608
        %v1616 = vmul.f32 %v1586, %v1613
        %1617 = vst [vmem:[%s7] sm:$0xff] %v1615
        %1618 = vst [vmem:[%s7 + $0x8] sm:$0xff] %v1616
      $region86: #{hyperbolic_jtnn_encoder_forward.1} parent=35 // pred_fallthru
        _
      // Predicated region
      $region87: #{hyperbolic_jtnn_encoder_forward.1} parent=35 // pred_check
        %p1619 = pneg %p132
      $region88: #{hyperbolic_jtnn_encoder_forward.1} parent=35 // pred_check_branch
        %1621 = sbr.rel (%p1619) target = $region90
      $region89: #{hyperbolic_jtnn_encoder_forward.1} parent=35 // pred_region
        _
      $region90: #{hyperbolic_jtnn_encoder_forward.1} parent=35 // pred_fallthru
        _
      // Predicated region
      $region91: #{hyperbolic_jtnn_encoder_forward.1} parent=35 // pred_check
        %p1622 = pneg %p153
      $region92: #{hyperbolic_jtnn_encoder_forward.1} parent=35 // pred_check_branch
        %1624 = sbr.rel (%p1622) target = $region94
      $region93: #{hyperbolic_jtnn_encoder_forward.1} parent=35 // pred_region
        _
      $region94: #{hyperbolic_jtnn_encoder_forward.1} parent=35 // pred_fallthru
        _
      // Predicated region
      $region95: #{hyperbolic_jtnn_encoder_forward.1} parent=35 // pred_check
        %p1625 = pneg %p132
      $region96: #{hyperbolic_jtnn_encoder_forward.1} parent=35 // pred_check_branch
        %1627 = sbr.rel (%p1625) target = $region98
      $region97: #{hyperbolic_jtnn_encoder_forward.1} parent=35 // pred_region
        _
      $region98: #{hyperbolic_jtnn_encoder_forward.1} parent=35 // pred_fallthru
        _
      // Predicated region
      $region99: #{hyperbolic_jtnn_encoder_forward.1} parent=35 // pred_check
        %p1628 = pneg %p153
      $region100: #{hyperbolic_jtnn_encoder_forward.1} parent=35 // pred_check_branch
        %1630 = sbr.rel (%p1628) target = $region102
      $region101: #{hyperbolic_jtnn_encoder_forward.1} parent=35 // pred_region
        _
      $region102: #{hyperbolic_jtnn_encoder_forward.1} parent=35 // pred_fallthru
        _
    $region36: #{hyperbolic_jtnn_encoder_forward.1} parent=5 // pred_fallthru
      _
    %p1631 = scmp.le.s32.totalorder 2, %s20
    // Predicated region
    $region103: #{hyperbolic_jtnn_encoder_forward.1} parent=5 // pred_check
      %p1632 = pneg %p1631
    $region104: #{hyperbolic_jtnn_encoder_forward.1} parent=5 // pred_check_branch
      %1634 = sbr.rel (%p1632) target = $region106
    $region105: #{hyperbolic_jtnn_encoder_forward.1} parent=5 // pred_region
      %s1635 = ssub.s32 %s20, 2
    $region106: #{hyperbolic_jtnn_encoder_forward.1} parent=5 // pred_fallthru
      _
  $region6: #{hyperbolic_jtnn_encoder_forward.1} parent=0 // loop_footer
    %s24 = sadd.s32 1, %s20
  $region7: #{hyperbolic_jtnn_encoder_forward.1} parent=0 // loop_footer_branch
    %19 = sbr.rel target = $region3
  $region8: #{hyperbolic_jtnn_encoder_forward.1} parent=0 // loop_exit
    _
  %1636 = vsyncmov [#allocation3]
  %s1637 = vpop.sfrf %1636
  %p1638 = scmp.eq.s32.totalorder %s1637, 0
  %p1639 = pneg %p1638
  %1641 = shalt.err (%p1639)

</llo_original>
